<compile_context>
chip_gen: v7x
topology: tpu7x:2x2x1
jax: 0.10.0
libtpu: 0.0.40
codegen_flags: <defaults>
</compile_context>

<pallas_src>
import numpy as np
import jax
import jax.numpy as jnp
from jax import lax
from jax.experimental import pallas as pl
from jax.experimental.pallas import tpu as pltpu

EPS = 1e-5          # BatchNorm2d default eps
SLOPE = 0.2         # LeakyReLU negative slope


def _leaky_relu(x, slope=SLOPE):
    return jnp.where(x >= 0, x, slope * x)


def preact_resblock_kernel(
    x_ref,        # [B, H, W*Cin]              f32
    lat_ref,      # [B, E]                     f32
    ada_w_ref,    # [E, 4*SEC]                 f32  (gamma1|bias1|gamma2|bias2, 128-aligned)
    ada_b_ref,    # [1, 4*SEC]                 f32
    r1_ref,       # [2*WCin, 2*WCin]           f32  block-diag regroup, 1/N folded in
    r2_ref,       # [2*WCout, 2*WCout]         f32
    w1_ref,       # [3*WCin, WCout]            bf16 conv1, dy taps concatenated along K
    w2_ref,       # [3*WCout, WCout]           bf16 conv2
    wsk_ref,      # [WCin, WCout]              bf16 1x1 skip (block diagonal)
    bsk_ref,      # [1, WCout]                 f32
    o_ref,        # [B, H, WCout]              f32
):
    B, H, WCin = x_ref.shape
    WCout = o_ref.shape[-1]
    BH = B * H
    SEC = ada_w_ref.shape[-1] // 4        # 128-aligned section width

    # ---- all four AdaptiveBatchNorm linears fused into one MXU dot.
    # Kept f32 (multi-pass) deliberately: it is tiny, off the serial BN->conv
    # critical path, and gamma/bias precision feeds both norm branches.
    gb = jnp.dot(lat_ref[...], ada_w_ref[...],
                 preferred_element_type=jnp.float32) + ada_b_ref[...]   # [B, 4*SEC]
    gamma1 = gb[:, None, 0:WCin]                      # 128-aligned section starts:
    bias1 = gb[:, None, SEC:SEC + WCin]               # no cross-lane shuffles
    gamma2 = gb[:, None, 2 * SEC:2 * SEC + WCout]
    bias2 = gb[:, None, 3 * SEC:3 * SEC + WCout]

    x3 = x_ref[...]                                   # [B, H, WCin]
    xf = x3.reshape(BH, WCin)

    # ---- skip branch first (1x1 conv == block-diag matmul); ends x's live range early
    out = jnp.dot(xf.astype(jnp.bfloat16), wsk_ref[...],
                  preferred_element_type=jnp.float32) + bsk_ref[...]    # [BH, WCout]

    ones_row = jnp.ones((1, BH), jnp.float32)

    # ---- n1: BatchNorm2d (training batch stats, affine=False), 2 fused MXU dots.
    # Stat/regroup dots stay f32: one-pass var E[x^2]-mean^2 is cancellation
    # sensitive, so we deliberately pay the multi-pass f32 MXU cost here.
    s1 = jnp.dot(ones_row, jnp.concatenate([xf, xf * xf], axis=-1),
                 preferred_element_type=jnp.float32)                    # [1, 2*WCin]
    reg1 = jnp.dot(s1, r1_ref[...], preferred_element_type=jnp.float32)
    mean1 = reg1[:, 0:WCin]                                             # [1, WCin]
    inv_std1 = lax.rsqrt(reg1[:, WCin:2 * WCin] - mean1 * mean1 + EPS)

    h3 = (x3 - mean1) * inv_std1
    h3 = _leaky_relu(h3 * gamma1 + bias1)                               # [B, H, WCin]
    hf = h3.reshape(BH, WCin)

    # ---- conv1: single K-concatenated MXU dot.  dy=-1/0/+1 operands come from
    # XLU sublane rolls + iota halo mask (no padded scratch, no store->load).
    row1 = lax.broadcasted_iota(jnp.int32, (B, H, WCin), 1).reshape(BH, WCin)
    dn1 = jnp.where(row1 == 0, 0.0, pltpu.roll(hf, shift=1, axis=0))       # row y-1
    up1 = jnp.where(row1 == H - 1, 0.0, pltpu.roll(hf, shift=BH - 1, axis=0))  # row y+1
    lhs1 = jnp.concatenate([dn1, hf, up1], axis=-1).astype(jnp.bfloat16)   # [BH, 3*WCin]
    acc = jnp.dot(lhs1, w1_ref[...], preferred_element_type=jnp.float32)   # [BH, WCout]

    # ---- n2 + adaptive affine + act (same 2-dot fused statistics)
    s2 = jnp.dot(ones_row, jnp.concatenate([acc, acc * acc], axis=-1),
                 preferred_element_type=jnp.float32)                    # [1, 2*WCout]
    reg2 = jnp.dot(s2, r2_ref[...], preferred_element_type=jnp.float32)
    mean2 = reg2[:, 0:WCout]
    inv_std2 = lax.rsqrt(reg2[:, WCout:2 * WCout] - mean2 * mean2 + EPS)

    h2 = (acc.reshape(B, H, WCout) - mean2) * inv_std2
    h2 = _leaky_relu(h2 * gamma2 + bias2)                               # [B, H, WCout]
    h2f = h2.reshape(BH, WCout)

    # ---- conv2: one more K-concatenated dot, accumulated into the skip
    row2 = lax.broadcasted_iota(jnp.int32, (B, H, WCout), 1).reshape(BH, WCout)
    dn2 = jnp.where(row2 == 0, 0.0, pltpu.roll(h2f, shift=1, axis=0))
    up2 = jnp.where(row2 == H - 1, 0.0, pltpu.roll(h2f, shift=BH - 1, axis=0))
    lhs2 = jnp.concatenate([dn2, h2f, up2], axis=-1).astype(jnp.bfloat16)  # [BH, 3*WCout]
    out = out + jnp.dot(lhs2, w2_ref[...], preferred_element_type=jnp.float32)

    o_ref[...] = out.reshape(B, H, WCout)              # lane-dense (W*Cout) store


def _vmem_limit_bytes(operands, out_bytes):
    need = sum(int(np.prod(a.shape)) * a.dtype.itemsize for a in operands) + out_bytes
    try:
        phys = int(pltpu.get_tpu_info().vmem_capacity_bytes)   # per-TensorCore VMEM
    except Exception:
        phys = 128 << 20                                       # v5e/v6e fallback
    cap = phys // 2            # ~32 MiB on v7x, ~64 MiB on v5e/v6e: headroom for a
    return int(min(cap, max(8 * need, 16 << 20)))              # future tiled grid


def preact_resblock(x_nchw, latents, params):
    """Wrapper: NCHW in / NCHW out; kernel works in lane-flattened [B, H, W*C]."""
    B, Cin, H, W = x_nchw.shape
    WCin = W * Cin
    WCout = params["w1_cat"].shape[-1]
    Cout = WCout // W

    # TODO(synk): keep NHWC end-to-end at production sizes (this transpose is an
    # extra mem-bound XLA op on both sides of the kernel).
    x = jnp.transpose(x_nchw, (0, 2, 3, 1)).reshape(B, H, WCin)

    operands = (
        x, latents,
        params["ada_w"], params["ada_b"], params["r1"], params["r2"],
        params["w1_cat"], params["w2_cat"], params["wsk"], params["bsk"],
    )

    out_flat = pl.pallas_call(
        preact_resblock_kernel,
        out_shape=jax.ShapeDtypeStruct((B, H, WCout), jnp.float32),
        in_specs=[pl.BlockSpec(memory_space=pltpu.MemorySpace.VMEM)] * len(operands),
        out_specs=pl.BlockSpec(memory_space=pltpu.MemorySpace.VMEM),
        compiler_params=pltpu.CompilerParams(
            vmem_limit_bytes=_vmem_limit_bytes(operands, B * H * WCout * 4)),
    )(*operands)

    out = out_flat.reshape(B, H, W, Cout)
    return jnp.transpose(out, (0, 3, 1, 2))            # -> NCHW


# ----------------------------- weight preprocessing -----------------------------
def spectral_normalize(w):
    """Divide weight by the largest singular value of w.reshape(out, -1).
    (PyTorch uses a 1-step power iteration per forward; here run to convergence.)"""
    m = w.reshape(w.shape[0], -1)
    v = jnp.ones((m.shape[1],), jnp.float32) / jnp.sqrt(float(m.shape[1]))
    for _ in range(50):
        u = m @ v
        u = u / (jnp.linalg.norm(u) + 1e-12)
        v = m.T @ u
        v = v / (jnp.linalg.norm(v) + 1e-12)
    sigma = u @ (m @ v)
    return w / sigma


def build_cat_conv_weight(w_hwio, W):
    """HWIO [3,3,Cin,Cout] -> [3*W*Cin, W*Cout]: dy (kernel-row) taps concatenated
    along K, dx taps baked in as W-banded blocks; missing blocks give SAME zero
    padding along W.  The LHS must be concat([rows y-1, rows y, rows y+1], lanes)."""
    w = np.asarray(w_hwio, np.float32)
    kh, kw, cin, cout = w.shape
    big = np.zeros((kh * W * cin, W * cout), np.float32)
    for dy in range(kh):
        base = dy * W * cin
        for wo in range(W):
            for dx in range(kw):
                wi = wo + dx - 1
                if 0 <= wi < W:
                    big[base + wi * cin:base + (wi + 1) * cin,
                        wo * cout:(wo + 1) * cout] = w[dy, dx]
    return big


def build_blockdiag_1x1(w_io, W):
    """1x1 conv [Cin,Cout] -> block-diagonal [W*Cin, W*Cout] for the flattened layout."""
    w = np.asarray(w_io, np.float32)
    cin, cout = w.shape
    big = np.zeros((W * cin, W * cout), np.float32)
    for p in range(W):
        big[p * cin:(p + 1) * cin, p * cout:(p + 1) * cout] = w
    return big


def build_stat_regroup(C, W, n_pix):
    """Regroup matrix for the fused [sum(x) | sum(x^2)] statistics row: sums the W
    copies of each channel in the lane dim and folds in 1/N.  [2*W*C, 2*W*C] f32."""
    r = np.tile(np.eye(C, dtype=np.float32), (W, W)) / float(n_pix)
    z = np.zeros_like(r)
    return np.block([[r, z], [z, r]])


def build_ada_params(g1w, g1b, b1w, b1b, g2w, g2b, b2w, b2b, W):
    """Fuse the 4 AdaptiveBatchNorm linears into one [E, 4*SEC] matrix with W-tiled,
    128-lane-aligned sections (gamma1 | bias1 | gamma2 | bias2), plus its bias row."""
    wcin = g1w.shape[1] * W
    wcout = g2w.shape[1] * W
    sec = ((max(wcin, wcout, 128) + 127) // 128) * 128

    def pad_w(m):
        return np.pad(m, ((0, 0), (0, sec - m.shape[1])))

    def pad_b(v):
        return np.pad(v, (0, sec - v.shape[0]))

    aw = np.concatenate([pad_w(np.tile(g1w, (1, W))), pad_w(np.tile(b1w, (1, W))),
                         pad_w(np.tile(g2w, (1, W))), pad_w(np.tile(b2w, (1, W)))],
                        axis=1).astype(np.float32)
    ab = np.concatenate([pad_b(np.tile(g1b, W)), pad_b(np.tile(b1b, W)),
                         pad_b(np.tile(g2b, W)), pad_b(np.tile(b2b, W))]
                        )[None, :].astype(np.float32)
    return aw, ab


# ----------------------------- pure-JAX reference -----------------------------
def ref_forward_nhwc(x, lat, p):
    gamma1 = lat @ p["g1w"] + p["g1b"]
    bias1 = lat @ p["b1w"] + p["b1b"]
    gamma2 = lat @ p["g2w"] + p["g2b"]
    bias2 = lat @ p["b2w"] + p["b2b"]

    def bn(v):
        m = v.mean(axis=(0, 1, 2), keepdims=True)
        var = ((v - m) ** 2).mean(axis=(0, 1, 2), keepdims=True)
        return (v - m) / jnp.sqrt(var + EPS)

    def conv3x3(v, w_hwio):
        return lax.conv_general_dilated(
            v, w_hwio, (1, 1), "SAME",
            dimension_numbers=("NHWC", "HWIO", "NHWC"))

    out = bn(x) * gamma1[:, None, None, :] + bias1[:, None, None, :]
    out = _leaky_relu(out)
    out = conv3x3(out, p["w1_hwio"])
    out = bn(out) * gamma2[:, None, None, :] + bias2[:, None, None, :]
    out = _leaky_relu(out)
    out = conv3x3(out, p["w2_hwio"])
    identity = jnp.einsum("bhwc,cd->bhwd", x, p["wsk"]) + p["bsk"]
    return identity + out


if __name__ == "__main__":
    B, H, W = 2, 16, 16
    Cin, Cout, E = 4, 8, 16

    key = jax.random.PRNGKey(0)
    ks = jax.random.split(key, 12)

    x_nchw = jax.random.normal(ks[0], (B, Cin, H, W), jnp.float32)
    latents = jax.random.normal(ks[1], (B, E), jnp.float32)

    # PyTorch-layout parameters, deterministic init
    w1_t = jax.random.normal(ks[2], (Cout, Cin, 3, 3), jnp.float32) * 0.2
    w2_t = jax.random.normal(ks[3], (Cout, Cout, 3, 3), jnp.float32) * 0.2
    wsk_t = jax.random.normal(ks[4], (Cout, Cin, 1, 1), jnp.float32) * 0.2
    bsk = jax.random.normal(ks[5], (Cout,), jnp.float32) * 0.1
    g1w_t = jax.random.normal(ks[6], (Cin, E), jnp.float32) * 0.2   # f_gamma of n1
    g1b = jnp.ones((Cin,), jnp.float32)
    b1w_t = jax.random.normal(ks[7], (Cin, E), jnp.float32) * 0.2   # f_bias of n1
    b1b = jnp.zeros((Cin,), jnp.float32)
    g2w_t = jax.random.normal(ks[8], (Cout, E), jnp.float32) * 0.2  # f_gamma of n2
    g2b = jnp.ones((Cout,), jnp.float32)
    b2w_t = jax.random.normal(ks[9], (Cout, E), jnp.float32) * 0.2  # f_bias of n2
    b2b = jnp.zeros((Cout,), jnp.float32)

    # spectral_norm on conv weights only (not the skip bias)
    w1_sn = spectral_normalize(w1_t)
    w2_sn = spectral_normalize(w2_t)
    wsk_sn = spectral_normalize(wsk_t)

    w1_hwio = jnp.transpose(w1_sn, (2, 3, 1, 0))          # [3,3,Cin,Cout]
    w2_hwio = jnp.transpose(w2_sn, (2, 3, 1, 0))          # [3,3,Cout,Cout]
    wsk_io = wsk_sn[:, :, 0, 0].T                         # [Cin,Cout]

    g1w, b1w = np.asarray(g1w_t.T), np.asarray(b1w_t.T)   # [E,Cin]
    g2w, b2w = np.asarray(g2w_t.T), np.asarray(b2w_t.T)   # [E,Cout]
    ada_w_np, ada_b_np = build_ada_params(
        g1w, np.asarray(g1b), b1w, np.asarray(b1b),
        g2w, np.asarray(g2b), b2w, np.asarray(b2b), W)

    n_pix = B * H * W
    params = dict(
        ada_w=jnp.asarray(ada_w_np, jnp.float32),          # f32 deliberately (tiny dot)
        ada_b=jnp.asarray(ada_b_np, jnp.float32),
        r1=jnp.asarray(build_stat_regroup(Cin, W, n_pix), jnp.float32),
        r2=jnp.asarray(build_stat_regroup(Cout, W, n_pix), jnp.float32),
        w1_cat=jnp.asarray(build_cat_conv_weight(w1_hwio, W)).astype(jnp.bfloat16),
        w2_cat=jnp.asarray(build_cat_conv_weight(w2_hwio, W)).astype(jnp.bfloat16),
        wsk=jnp.asarray(build_blockdiag_1x1(wsk_io, W)).astype(jnp.bfloat16),
        bsk=jnp.asarray(np.tile(np.asarray(bsk), W))[None, :].astype(jnp.float32),
    )

    out = preact_resblock(x_nchw, latents, params)
    out = jax.block_until_ready(out)

    # cross-check against a pure-JAX f32 reference
    ref_p = dict(g1w=jnp.asarray(g1w), g1b=g1b, b1w=jnp.asarray(b1w), b1b=b1b,
                 g2w=jnp.asarray(g2w), g2b=g2b, b2w=jnp.asarray(b2w), b2b=b2b,
                 w1_hwio=w1_hwio, w2_hwio=w2_hwio, wsk=wsk_io, bsk=bsk)
    x_nhwc = jnp.transpose(x_nchw, (0, 2, 3, 1))
    ref = jnp.transpose(ref_forward_nhwc(x_nhwc, latents, ref_p), (0, 3, 1, 2))
    max_err = float(jnp.max(jnp.abs(out - ref)))
    assert out.shape == (B, Cout, H, W), out.shape
    # loose tol: conv/skip matmul operands are bf16 (f32 accumulation), reference is f32
    assert max_err < 5e-2, f"max abs err {max_err}"

    print("KERNEL_OK")
</pallas_src>

<mosaic_0001>
module attributes {stable_mosaic.version = 11 : i64} {
  func.func @preact_resblock_kernel(%arg0: memref<2x16x64xf32, #tpu.memory_space<vmem>>, %arg1: memref<2x16xf32, #tpu.memory_space<vmem>>, %arg2: memref<16x512xf32, #tpu.memory_space<vmem>>, %arg3: memref<1x512xf32, #tpu.memory_space<vmem>>, %arg4: memref<128x128xf32, #tpu.memory_space<vmem>>, %arg5: memref<256x256xf32, #tpu.memory_space<vmem>>, %arg6: memref<192x128xbf16, #tpu.memory_space<vmem>>, %arg7: memref<384x128xbf16, #tpu.memory_space<vmem>>, %arg8: memref<64x128xbf16, #tpu.memory_space<vmem>>, %arg9: memref<1x128xf32, #tpu.memory_space<vmem>>, %arg10: memref<2x16x128xf32, #tpu.memory_space<vmem>>) attributes {dimension_semantics = [], scalar_prefetch = 0 : i64, scratch_operands = 0 : i64, tpu.core_type = #tpu.core_type<tc>} {
    %c0 = arith.constant 0 : index
    %c0_0 = arith.constant 0 : index
    %0 = vector.load %arg1[%c0, %c0_0] : memref<2x16xf32, #tpu.memory_space<vmem>>, vector<2x16xf32>
    %c0_1 = arith.constant 0 : index
    %c0_2 = arith.constant 0 : index
    %1 = vector.load %arg2[%c0_1, %c0_2] : memref<16x512xf32, #tpu.memory_space<vmem>>, vector<16x512xf32>
    %cst = arith.constant dense<0.000000e+00> : vector<2x512xf32>
    %2 = tpu.matmul %0, %1, %cst {dimension_numbers = #tpu.dot_dimension_numbers<[1], [0], [0], [1], [0, 0, 1, 1], [], []>} : vector<2x16xf32>, vector<16x512xf32>, vector<2x512xf32> -> vector<2x512xf32>
    %c0_3 = arith.constant 0 : index
    %c0_4 = arith.constant 0 : index
    %3 = vector.load %arg3[%c0_3, %c0_4] : memref<1x512xf32, #tpu.memory_space<vmem>>, vector<1x512xf32>
    %4 = vector.broadcast %3 : vector<1x512xf32> to vector<2x512xf32>
    %5 = arith.addf %2, %4 : vector<2x512xf32>
    %6 = vector.extract_strided_slice %5 {offsets = [0, 0], sizes = [2, 64], strides = [1, 1]} : vector<2x512xf32> to vector<2x64xf32>
    %7 = vector.shape_cast %6 : vector<2x64xf32> to vector<2x1x64xf32>
    %8 = vector.extract_strided_slice %5 {offsets = [0, 128], sizes = [2, 64], strides = [1, 1]} : vector<2x512xf32> to vector<2x64xf32>
    %9 = vector.shape_cast %8 : vector<2x64xf32> to vector<2x1x64xf32>
    %10 = vector.extract_strided_slice %5 {offsets = [0, 256], sizes = [2, 128], strides = [1, 1]} : vector<2x512xf32> to vector<2x128xf32>
    %11 = vector.shape_cast %10 : vector<2x128xf32> to vector<2x1x128xf32>
    %12 = vector.extract_strided_slice %5 {offsets = [0, 384], sizes = [2, 128], strides = [1, 1]} : vector<2x512xf32> to vector<2x128xf32>
    %13 = vector.shape_cast %12 : vector<2x128xf32> to vector<2x1x128xf32>
    %c0_5 = arith.constant 0 : index
    %c0_6 = arith.constant 0 : index
    %c0_7 = arith.constant 0 : index
    %14 = vector.load %arg0[%c0_5, %c0_6, %c0_7] : memref<2x16x64xf32, #tpu.memory_space<vmem>>, vector<2x16x64xf32>
    %15 = vector.shape_cast %14 : vector<2x16x64xf32> to vector<32x64xf32>
    %16 = arith.truncf %15 : vector<32x64xf32> to vector<32x64xbf16>
    %c0_8 = arith.constant 0 : index
    %c0_9 = arith.constant 0 : index
    %17 = vector.load %arg8[%c0_8, %c0_9] : memref<64x128xbf16, #tpu.memory_space<vmem>>, vector<64x128xbf16>
    %cst_10 = arith.constant dense<0.000000e+00> : vector<32x128xf32>
    %18 = tpu.matmul %16, %17, %cst_10 {dimension_numbers = #tpu.dot_dimension_numbers<[1], [0], [0], [1], [0, 0, 1, 1], [], []>} : vector<32x64xbf16>, vector<64x128xbf16>, vector<32x128xf32> -> vector<32x128xf32>
    %c0_11 = arith.constant 0 : index
    %c0_12 = arith.constant 0 : index
    %19 = vector.load %arg9[%c0_11, %c0_12] : memref<1x128xf32, #tpu.memory_space<vmem>>, vector<1x128xf32>
    %20 = vector.broadcast %19 : vector<1x128xf32> to vector<32x128xf32>
    %21 = arith.addf %18, %20 : vector<32x128xf32>
    %cst_13 = arith.constant 1.000000e+00 : f32
    %22 = vector.broadcast %cst_13 : f32 to vector<1x32xf32>
    %23 = arith.mulf %15, %15 : vector<32x64xf32>
    %24 = tpu.concatenate %15, %23 in 1 : vector<32x64xf32>, vector<32x64xf32> -> vector<32x128xf32>
    %cst_14 = arith.constant dense<0.000000e+00> : vector<1x128xf32>
    %25 = tpu.matmul %22, %24, %cst_14 {dimension_numbers = #tpu.dot_dimension_numbers<[1], [0], [0], [1], [0, 0, 1, 1], [], []>} : vector<1x32xf32>, vector<32x128xf32>, vector<1x128xf32> -> vector<1x128xf32>
    %c0_15 = arith.constant 0 : index
    %c0_16 = arith.constant 0 : index
    %26 = vector.load %arg4[%c0_15, %c0_16] : memref<128x128xf32, #tpu.memory_space<vmem>>, vector<128x128xf32>
    %cst_17 = arith.constant dense<0.000000e+00> : vector<1x128xf32>
    %27 = tpu.matmul %25, %26, %cst_17 {dimension_numbers = #tpu.dot_dimension_numbers<[1], [0], [0], [1], [0, 0, 1, 1], [], []>} : vector<1x128xf32>, vector<128x128xf32>, vector<1x128xf32> -> vector<1x128xf32>
    %28 = vector.extract_strided_slice %27 {offsets = [0, 0], sizes = [1, 64], strides = [1, 1]} : vector<1x128xf32> to vector<1x64xf32>
    %29 = vector.extract_strided_slice %27 {offsets = [0, 64], sizes = [1, 64], strides = [1, 1]} : vector<1x128xf32> to vector<1x64xf32>
    %30 = arith.mulf %28, %28 : vector<1x64xf32>
    %31 = arith.subf %29, %30 : vector<1x64xf32>
    %cst_18 = arith.constant 9.99999974E-6 : f32
    %32 = vector.broadcast %cst_18 : f32 to vector<1x64xf32>
    %33 = arith.addf %31, %32 : vector<1x64xf32>
    %34 = math.rsqrt %33 : vector<1x64xf32>
    %35 = vector.shape_cast %28 : vector<1x64xf32> to vector<1x1x64xf32>
    %36 = vector.broadcast %35 : vector<1x1x64xf32> to vector<2x16x64xf32>
    %37 = arith.subf %14, %36 : vector<2x16x64xf32>
    %38 = vector.shape_cast %34 : vector<1x64xf32> to vector<1x1x64xf32>
    %39 = vector.broadcast %38 : vector<1x1x64xf32> to vector<2x16x64xf32>
    %40 = arith.mulf %37, %39 : vector<2x16x64xf32>
    %41 = vector.broadcast %7 : vector<2x1x64xf32> to vector<2x16x64xf32>
    %42 = arith.mulf %40, %41 : vector<2x16x64xf32>
    %43 = vector.broadcast %9 : vector<2x1x64xf32> to vector<2x16x64xf32>
    %44 = arith.addf %42, %43 : vector<2x16x64xf32>
    %cst_19 = arith.constant 0.000000e+00 : f32
    %45 = vector.broadcast %cst_19 : f32 to vector<2x16x64xf32>
    %46 = arith.cmpf oge, %44, %45 : vector<2x16x64xf32>
    %cst_20 = arith.constant 2.000000e-01 : f32
    %47 = vector.broadcast %cst_20 : f32 to vector<2x16x64xf32>
    %48 = arith.mulf %47, %44 : vector<2x16x64xf32>
    %49 = arith.select %46, %44, %48 : vector<2x16x64xi1>, vector<2x16x64xf32>
    %50 = vector.shape_cast %49 : vector<2x16x64xf32> to vector<32x64xf32>
    %51 = tpu.iota {dimensions = array<i32: 1>} : vector<2x16x64xi32>
    %52 = vector.shape_cast %51 : vector<2x16x64xi32> to vector<32x64xi32>
    %c0_i32 = arith.constant 0 : i32
    %53 = vector.broadcast %c0_i32 : i32 to vector<32x64xi32>
    %54 = arith.cmpi eq, %52, %53 : vector<32x64xi32>
    %c1_i32 = arith.constant 1 : i32
    %55 = tpu.dynamic_rotate %50 by %c1_i32 dim 0 : vector<32x64xf32>, i32 -> vector<32x64xf32>
    %cst_21 = arith.constant 0.000000e+00 : f32
    %56 = vector.broadcast %cst_21 : f32 to vector<32x64xf32>
    %57 = arith.select %54, %56, %55 : vector<32x64xi1>, vector<32x64xf32>
    %c15_i32 = arith.constant 15 : i32
    %58 = vector.broadcast %c15_i32 : i32 to vector<32x64xi32>
    %59 = arith.cmpi eq, %52, %58 : vector<32x64xi32>
    %c31_i32 = arith.constant 31 : i32
    %60 = tpu.dynamic_rotate %50 by %c31_i32 dim 0 : vector<32x64xf32>, i32 -> vector<32x64xf32>
    %cst_22 = arith.constant 0.000000e+00 : f32
    %61 = vector.broadcast %cst_22 : f32 to vector<32x64xf32>
    %62 = arith.select %59, %61, %60 : vector<32x64xi1>, vector<32x64xf32>
    %63 = tpu.concatenate %57, %50, %62 in 1 : vector<32x64xf32>, vector<32x64xf32>, vector<32x64xf32> -> vector<32x192xf32>
    %64 = arith.truncf %63 : vector<32x192xf32> to vector<32x192xbf16>
    %c0_23 = arith.constant 0 : index
    %c0_24 = arith.constant 0 : index
    %65 = vector.load %arg6[%c0_23, %c0_24] : memref<192x128xbf16, #tpu.memory_space<vmem>>, vector<192x128xbf16>
    %cst_25 = arith.constant dense<0.000000e+00> : vector<32x128xf32>
    %66 = tpu.matmul %64, %65, %cst_25 {dimension_numbers = #tpu.dot_dimension_numbers<[1], [0], [0], [1], [0, 0, 1, 1], [], []>} : vector<32x192xbf16>, vector<192x128xbf16>, vector<32x128xf32> -> vector<32x128xf32>
    %67 = arith.mulf %66, %66 : vector<32x128xf32>
    %68 = tpu.concatenate %66, %67 in 1 : vector<32x128xf32>, vector<32x128xf32> -> vector<32x256xf32>
    %cst_26 = arith.constant dense<0.000000e+00> : vector<1x256xf32>
    %69 = tpu.matmul %22, %68, %cst_26 {dimension_numbers = #tpu.dot_dimension_numbers<[1], [0], [0], [1], [0, 0, 1, 1], [], []>} : vector<1x32xf32>, vector<32x256xf32>, vector<1x256xf32> -> vector<1x256xf32>
    %c0_27 = arith.constant 0 : index
    %c0_28 = arith.constant 0 : index
    %70 = vector.load %arg5[%c0_27, %c0_28] : memref<256x256xf32, #tpu.memory_space<vmem>>, vector<256x256xf32>
    %cst_29 = arith.constant dense<0.000000e+00> : vector<1x256xf32>
    %71 = tpu.matmul %69, %70, %cst_29 {dimension_numbers = #tpu.dot_dimension_numbers<[1], [0], [0], [1], [0, 0, 1, 1], [], []>} : vector<1x256xf32>, vector<256x256xf32>, vector<1x256xf32> -> vector<1x256xf32>
    %72 = vector.extract_strided_slice %71 {offsets = [0, 0], sizes = [1, 128], strides = [1, 1]} : vector<1x256xf32> to vector<1x128xf32>
    %73 = vector.extract_strided_slice %71 {offsets = [0, 128], sizes = [1, 128], strides = [1, 1]} : vector<1x256xf32> to vector<1x128xf32>
    %74 = arith.mulf %72, %72 : vector<1x128xf32>
    %75 = arith.subf %73, %74 : vector<1x128xf32>
    %cst_30 = arith.constant 9.99999974E-6 : f32
    %76 = vector.broadcast %cst_30 : f32 to vector<1x128xf32>
    %77 = arith.addf %75, %76 : vector<1x128xf32>
    %78 = math.rsqrt %77 : vector<1x128xf32>
    %79 = vector.shape_cast %66 : vector<32x128xf32> to vector<2x16x128xf32>
    %80 = vector.shape_cast %72 : vector<1x128xf32> to vector<1x1x128xf32>
    %81 = vector.broadcast %80 : vector<1x1x128xf32> to vector<2x16x128xf32>
    %82 = arith.subf %79, %81 : vector<2x16x128xf32>
    %83 = vector.shape_cast %78 : vector<1x128xf32> to vector<1x1x128xf32>
    %84 = vector.broadcast %83 : vector<1x1x128xf32> to vector<2x16x128xf32>
    %85 = arith.mulf %82, %84 : vector<2x16x128xf32>
    %86 = vector.broadcast %11 : vector<2x1x128xf32> to vector<2x16x128xf32>
    %87 = arith.mulf %85, %86 : vector<2x16x128xf32>
    %88 = vector.broadcast %13 : vector<2x1x128xf32> to vector<2x16x128xf32>
    %89 = arith.addf %87, %88 : vector<2x16x128xf32>
    %cst_31 = arith.constant 0.000000e+00 : f32
    %90 = vector.broadcast %cst_31 : f32 to vector<2x16x128xf32>
    %91 = arith.cmpf oge, %89, %90 : vector<2x16x128xf32>
    %cst_32 = arith.constant 2.000000e-01 : f32
    %92 = vector.broadcast %cst_32 : f32 to vector<2x16x128xf32>
    %93 = arith.mulf %92, %89 : vector<2x16x128xf32>
    %94 = arith.select %91, %89, %93 : vector<2x16x128xi1>, vector<2x16x128xf32>
    %95 = vector.shape_cast %94 : vector<2x16x128xf32> to vector<32x128xf32>
    %96 = tpu.iota {dimensions = array<i32: 1>} : vector<2x16x128xi32>
    %97 = vector.shape_cast %96 : vector<2x16x128xi32> to vector<32x128xi32>
    %c0_i32_33 = arith.constant 0 : i32
    %98 = vector.broadcast %c0_i32_33 : i32 to vector<32x128xi32>
    %99 = arith.cmpi eq, %97, %98 : vector<32x128xi32>
    %c1_i32_34 = arith.constant 1 : i32
    %100 = tpu.dynamic_rotate %95 by %c1_i32_34 dim 0 : vector<32x128xf32>, i32 -> vector<32x128xf32>
    %cst_35 = arith.constant 0.000000e+00 : f32
    %101 = vector.broadcast %cst_35 : f32 to vector<32x128xf32>
    %102 = arith.select %99, %101, %100 : vector<32x128xi1>, vector<32x128xf32>
    %c15_i32_36 = arith.constant 15 : i32
    %103 = vector.broadcast %c15_i32_36 : i32 to vector<32x128xi32>
    %104 = arith.cmpi eq, %97, %103 : vector<32x128xi32>
    %c31_i32_37 = arith.constant 31 : i32
    %105 = tpu.dynamic_rotate %95 by %c31_i32_37 dim 0 : vector<32x128xf32>, i32 -> vector<32x128xf32>
    %cst_38 = arith.constant 0.000000e+00 : f32
    %106 = vector.broadcast %cst_38 : f32 to vector<32x128xf32>
    %107 = arith.select %104, %106, %105 : vector<32x128xi1>, vector<32x128xf32>
    %108 = tpu.concatenate %102, %95, %107 in 1 : vector<32x128xf32>, vector<32x128xf32>, vector<32x128xf32> -> vector<32x384xf32>
    %109 = arith.truncf %108 : vector<32x384xf32> to vector<32x384xbf16>
    %c0_39 = arith.constant 0 : index
    %c0_40 = arith.constant 0 : index
    %110 = vector.load %arg7[%c0_39, %c0_40] : memref<384x128xbf16, #tpu.memory_space<vmem>>, vector<384x128xbf16>
    %cst_41 = arith.constant dense<0.000000e+00> : vector<32x128xf32>
    %111 = tpu.matmul %109, %110, %cst_41 {dimension_numbers = #tpu.dot_dimension_numbers<[1], [0], [0], [1], [0, 0, 1, 1], [], []>} : vector<32x384xbf16>, vector<384x128xbf16>, vector<32x128xf32> -> vector<32x128xf32>
    %112 = arith.addf %21, %111 : vector<32x128xf32>
    %113 = vector.shape_cast %112 : vector<32x128xf32> to vector<2x16x128xf32>
    %c0_42 = arith.constant 0 : index
    %c0_43 = arith.constant 0 : index
    %c0_44 = arith.constant 0 : index
    %114 = vector.load %arg10[%c0_42, %c0_43, %c0_44] : memref<2x16x128xf32, #tpu.memory_space<vmem>>, vector<2x16x128xf32>
    tpu.vector_store %arg10[%c0_42, %c0_43, %c0_44], %113 {strides = array<i32>} : memref<2x16x128xf32, #tpu.memory_space<vmem>>, vector<2x16x128xf32>,
    return
  }
}

</mosaic_0001>

<llo_original>
// kernel: tpu_custom_call.1
$region0: #{tpu_custom_call.1}
  #allocation0 [shape = 'u32[]', space=smem, size = 0x4, offset = 0x4, fixed_abs, tag = 'smem constant byte address 0x4 - core index']
  #allocation1 [shape = 'u32[144,128]{1,0:T(1,128)}', space=vmem, size = 0x12000, scoped, tag = 'internal scratch']
  %s0 = inlined_call_operand.hbm [shape: f32[2,16,64], index: 0, kind: input, shape index: {}]
  %s1 = inlined_call_operand.vmem [shape: f32[2,16], index: 1, kind: input, shape index: {}]
  %s2 = inlined_call_operand.hbm [shape: f32[16,512], index: 2, kind: input, shape index: {}]
  %s3 = inlined_call_operand.vmem [shape: f32[1,512], index: 3, kind: input, shape index: {}]
  %s4 = inlined_call_operand.hbm [shape: f32[128,128], index: 4, kind: input, shape index: {}]
  %s5 = inlined_call_operand.hbm [shape: f32[256,256], index: 5, kind: input, shape index: {}]
  %s6 = inlined_call_operand.hbm [shape: bf16[192,128], index: 6, kind: input, shape index: {}]
  %s7 = inlined_call_operand.hbm [shape: bf16[384,128], index: 7, kind: input, shape index: {}]
  %s8 = inlined_call_operand.hbm [shape: bf16[64,128], index: 8, kind: input, shape index: {}]
  %s9 = inlined_call_operand.vmem [shape: f32[1,128], index: 9, kind: input, shape index: {}]
  %s10 = inlined_call_operand.hbm [shape: f32[2,16,128], index: 10, kind: output, shape index: {}]
  %s11 = sld [smem:[#allocation0]]
  $region78: #{tpu_custom_call.1} parent=0
    _
  %s13 = ssub.s32 1, %s11
  %s14 = scalar_select 0, %s13, %s11
  $region1: #{tpu_custom_call.1} parent=0
    #allocation2 [shape = 'u8[16384]{0}', space=vmem, size = 0x4000, scoped, tag = 'input window, operand 0, single buffered']
    #allocation3 [shape = 's32[1]{0}', space=sflag, size = 0x4, scoped, tag = 'scoped memory for tpu_custom_call.1']
    #allocation4 [shape = 's32[1]{0}', space=sflag, size = 0x4, scoped, tag = 'scoped memory for tpu_custom_call.1']
    #allocation5 [shape = 'u8[32768]{0}', space=vmem, size = 0x8000, scoped, tag = 'input window, operand 2, single buffered']
    #allocation6 [shape = 's32[1]{0}', space=sflag, size = 0x4, scoped, tag = 'scoped memory for tpu_custom_call.1']
    #allocation7 [shape = 'u8[65536]{0}', space=vmem, size = 0x10000, scoped, tag = 'input window, operand 4, single buffered']
    #allocation8 [shape = 'u8[262144]{0}', space=vmem, size = 0x40000, scoped, tag = 'input window, operand 5, single buffered']
    #allocation9 [shape = 's32[1]{0}', space=sflag, size = 0x4, scoped, tag = 'scoped memory for tpu_custom_call.1']
    #allocation10 [shape = 'u8[49152]{0}', space=vmem, size = 0xc000, scoped, tag = 'input window, operand 6, single buffered']
    #allocation11 [shape = 'u8[98304]{0}', space=vmem, size = 0x18000, scoped, tag = 'input window, operand 7, single buffered']
    #allocation12 [shape = 's32[1]{0}', space=sflag, size = 0x4, scoped, tag = 'scoped memory for tpu_custom_call.1']
    #allocation13 [shape = 'u8[16384]{0}', space=vmem, size = 0x4000, scoped, tag = 'input window, operand 8, single buffered']
    #allocation14 [shape = 'u8[16384]{0}', space=vmem, size = 0x4000, scoped, tag = 'output window, operand 0, single buffered']
    %15 = vsyncpa [#allocation3], 0
    %16 = vsyncpa [#allocation6], 0
    %17 = vsyncpa [#allocation9], 0
    %18 = vsyncpa [#allocation12], 0
    %19 = vsyncpa [#allocation4], 0
    // Predicated region
    $region2: #{tpu_custom_call.1} parent=1 // pred_check
      _
    $region3: #{tpu_custom_call.1} parent=1 // pred_check_branch
      %21 = sbr.rel (0) target = $region5
    $region4: #{tpu_custom_call.1} parent=1 // pred_region
      %s23 = ssub.s32 512, 512
      %24 = vsyncadd [#allocation3], %s23
      %s25 = sshll.u32 [#allocation2], 4
      %s26 = int_to_ptr.vmem [resolvable:$true] %s25
      %31 = dma.hbm_to_vmem [thread:$0]  %s0, 512, %s26, [#allocation3], 128, 128, 8
    $region5: #{tpu_custom_call.1} parent=1 // pred_fallthru
      _
    // Predicated region
    $region6: #{tpu_custom_call.1} parent=1 // pred_check
      _
    $region7: #{tpu_custom_call.1} parent=1 // pred_check_branch
      %33 = sbr.rel (0) target = $region9
    $region8: #{tpu_custom_call.1} parent=1 // pred_region
      _
    $region9: #{tpu_custom_call.1} parent=1 // pred_fallthru
      _
    // Predicated region
    $region10: #{tpu_custom_call.1} parent=1 // pred_check
      _
    $region11: #{tpu_custom_call.1} parent=1 // pred_check_branch
      %35 = sbr.rel (0) target = $region13
    $region12: #{tpu_custom_call.1} parent=1 // pred_region
      %s37 = ssub.s32 1024, 1024
      %38 = vsyncadd [#allocation6], %s37
      %s39 = sshll.u32 [#allocation5], 4
      %s40 = int_to_ptr.vmem [resolvable:$true] %s39
      %45 = dma.hbm_to_vmem [thread:$0]  %s2, 1024, %s40, [#allocation6], 512, 512, 32
    $region13: #{tpu_custom_call.1} parent=1 // pred_fallthru
      _
    // Predicated region
    $region14: #{tpu_custom_call.1} parent=1 // pred_check
      _
    $region15: #{tpu_custom_call.1} parent=1 // pred_check_branch
      %47 = sbr.rel (0) target = $region17
    $region16: #{tpu_custom_call.1} parent=1 // pred_region
      _
    $region17: #{tpu_custom_call.1} parent=1 // pred_fallthru
      _
    // Predicated region
    $region18: #{tpu_custom_call.1} parent=1 // pred_check
      _
    $region19: #{tpu_custom_call.1} parent=1 // pred_check_branch
      %49 = sbr.rel (0) target = $region21
    $region20: #{tpu_custom_call.1} parent=1 // pred_region
      %s51 = ssub.s32 2048, 2048
      %52 = vsyncadd [#allocation6], %s51
      %s53 = sshll.u32 [#allocation7], 4
      %s54 = int_to_ptr.vmem [resolvable:$true] %s53
      %59 = dma.hbm_to_vmem [thread:$0]  %s4, 2048, %s54, [#allocation6], 128, 128, 8
    $region21: #{tpu_custom_call.1} parent=1 // pred_fallthru
      _
    // Predicated region
    $region22: #{tpu_custom_call.1} parent=1 // pred_check
      _
    $region23: #{tpu_custom_call.1} parent=1 // pred_check_branch
      %61 = sbr.rel (0) target = $region25
    $region24: #{tpu_custom_call.1} parent=1 // pred_region
      %s63 = ssub.s32 8192, 8192
      %64 = vsyncadd [#allocation9], %s63
      %s65 = sshll.u32 [#allocation8], 4
      %s66 = int_to_ptr.vmem [resolvable:$true] %s65
      %71 = dma.hbm_to_vmem [thread:$0]  %s5, 8192, %s66, [#allocation9], 256, 256, 16
    $region25: #{tpu_custom_call.1} parent=1 // pred_fallthru
      _
    // Predicated region
    $region26: #{tpu_custom_call.1} parent=1 // pred_check
      _
    $region27: #{tpu_custom_call.1} parent=1 // pred_check_branch
      %73 = sbr.rel (0) target = $region29
    $region28: #{tpu_custom_call.1} parent=1 // pred_region
      %s75 = ssub.s32 1536, 1536
      %76 = vsyncadd [#allocation9], %s75
      %s77 = sshll.u32 [#allocation10], 4
      %s78 = int_to_ptr.vmem [resolvable:$true] %s77
      %83 = dma.hbm_to_vmem [thread:$0]  %s6, 1536, %s78, [#allocation9], 64, 64, 4
    $region29: #{tpu_custom_call.1} parent=1 // pred_fallthru
      _
    // Predicated region
    $region30: #{tpu_custom_call.1} parent=1 // pred_check
      _
    $region31: #{tpu_custom_call.1} parent=1 // pred_check_branch
      %85 = sbr.rel (0) target = $region33
    $region32: #{tpu_custom_call.1} parent=1 // pred_region
      %s87 = ssub.s32 3072, 3072
      %88 = vsyncadd [#allocation12], %s87
      %s89 = sshll.u32 [#allocation11], 4
      %s90 = int_to_ptr.vmem [resolvable:$true] %s89
      %95 = dma.hbm_to_vmem [thread:$0]  %s7, 3072, %s90, [#allocation12], 64, 64, 4
    $region33: #{tpu_custom_call.1} parent=1 // pred_fallthru
      _
    // Predicated region
    $region34: #{tpu_custom_call.1} parent=1 // pred_check
      _
    $region35: #{tpu_custom_call.1} parent=1 // pred_check_branch
      %97 = sbr.rel (0) target = $region37
    $region36: #{tpu_custom_call.1} parent=1 // pred_region
      %s99 = ssub.s32 512, 512
      %100 = vsyncadd [#allocation12], %s99
      %s101 = sshll.u32 [#allocation13], 4
      %s102 = int_to_ptr.vmem [resolvable:$true] %s101
      %107 = dma.hbm_to_vmem [thread:$0]  %s8, 512, %s102, [#allocation12], 64, 64, 4
    $region37: #{tpu_custom_call.1} parent=1 // pred_fallthru
      _
    // Predicated region
    $region38: #{tpu_custom_call.1} parent=1 // pred_check
      _
    $region39: #{tpu_custom_call.1} parent=1 // pred_check_branch
      %109 = sbr.rel (0) target = $region41
    $region40: #{tpu_custom_call.1} parent=1 // pred_region
      _
    $region41: #{tpu_custom_call.1} parent=1 // pred_fallthru
      _
    // Predicated region
    $region42: #{tpu_custom_call.1} parent=1 // pred_check
      _
    $region43: #{tpu_custom_call.1} parent=1 // pred_check_branch
      %111 = sbr.rel (0) target = $region45
    $region44: #{tpu_custom_call.1} parent=1 // pred_region
      %112 = dma.done [#allocation3], 512
    $region45: #{tpu_custom_call.1} parent=1 // pred_fallthru
      _
    // Predicated region
    $region46: #{tpu_custom_call.1} parent=1 // pred_check
      _
    $region47: #{tpu_custom_call.1} parent=1 // pred_check_branch
      %114 = sbr.rel (0) target = $region49
    $region48: #{tpu_custom_call.1} parent=1 // pred_region
      %115 = dma.done [#allocation6], 1024
    $region49: #{tpu_custom_call.1} parent=1 // pred_fallthru
      _
    // Predicated region
    $region50: #{tpu_custom_call.1} parent=1 // pred_check
      _
    $region51: #{tpu_custom_call.1} parent=1 // pred_check_branch
      %117 = sbr.rel (0) target = $region53
    $region52: #{tpu_custom_call.1} parent=1 // pred_region
      %118 = dma.done [#allocation6], 2048
    $region53: #{tpu_custom_call.1} parent=1 // pred_fallthru
      _
    // Predicated region
    $region54: #{tpu_custom_call.1} parent=1 // pred_check
      _
    $region55: #{tpu_custom_call.1} parent=1 // pred_check_branch
      %120 = sbr.rel (0) target = $region57
    $region56: #{tpu_custom_call.1} parent=1 // pred_region
      %121 = dma.done [#allocation9], 8192
    $region57: #{tpu_custom_call.1} parent=1 // pred_fallthru
      _
    // Predicated region
    $region58: #{tpu_custom_call.1} parent=1 // pred_check
      _
    $region59: #{tpu_custom_call.1} parent=1 // pred_check_branch
      %123 = sbr.rel (0) target = $region61
    $region60: #{tpu_custom_call.1} parent=1 // pred_region
      %124 = dma.done [#allocation9], 1536
    $region61: #{tpu_custom_call.1} parent=1 // pred_fallthru
      _
    // Predicated region
    $region62: #{tpu_custom_call.1} parent=1 // pred_check
      _
    $region63: #{tpu_custom_call.1} parent=1 // pred_check_branch
      %126 = sbr.rel (0) target = $region65
    $region64: #{tpu_custom_call.1} parent=1 // pred_region
      %127 = dma.done [#allocation12], 3072
    $region65: #{tpu_custom_call.1} parent=1 // pred_fallthru
      _
    // Predicated region
    $region66: #{tpu_custom_call.1} parent=1 // pred_check
      _
    $region67: #{tpu_custom_call.1} parent=1 // pred_check_branch
      %129 = sbr.rel (0) target = $region69
    $region68: #{tpu_custom_call.1} parent=1 // pred_region
      %130 = dma.done [#allocation12], 512
    $region69: #{tpu_custom_call.1} parent=1 // pred_fallthru
      _
    %v132 = vld [vmem:[%s1] sm:$0x3]
    %v133 = vld [vmem:[#allocation5] sm:$0xff]
    %v134 = vld [vmem:[#allocation5 + $0x8] sm:$0xff]
    %v135 = vld [vmem:[#allocation5 + $0x10] sm:$0xff]
    %v136 = vld [vmem:[#allocation5 + $0x18] sm:$0xff]
    %v137 = vld [vmem:[#allocation5 + $0x20] sm:$0xff]
    %v138 = vld [vmem:[#allocation5 + $0x28] sm:$0xff]
    %v139 = vld [vmem:[#allocation5 + $0x30] sm:$0xff]
    %v140 = vld [vmem:[#allocation5 + $0x38] sm:$0xff]
    %v141 = vld [vmem:[%s3] sm:$0xf]
    %v143 = vlaneseq
    %v144 = vshrl.u32 %v143, 7
    %v145 = vsub.s32 0, %v144
    %v146 = vrot.slane %v141, %v145
    %v147 = vlaneseq
    %v148 = vshrl.u32 %v147, 7
    %v149 = vsub.s32 1, %v148
    %v150 = vrot.slane %v141, %v149
    %v151 = vlaneseq
    %v152 = vshrl.u32 %v151, 7
    %v153 = vsub.s32 2, %v152
    %v154 = vrot.slane %v141, %v153
    %v155 = vlaneseq
    %v156 = vshrl.u32 %v155, 7
    %v157 = vsub.s32 3, %v156
    %v158 = vrot.slane %v141, %v157
    %vm163 = vcmask 130048
    %v165 = vsel %vm163, %v132, 0
    %167 = vmatprep.subr.mxu0 %v134
    %168 = vmatpush1.msra.mxu0 %v133
    %169 = vmatprep.subr.mxu0 %v138
    %170 = vmatpush1.msra.mxu0 %v137
    %171 = vmatprep.subr.mxu0 0.0
    %172 = vmatpush1.msra.mxu0 0.0
    %173 = vmatprep.subr.mxu0 0.0
    %174 = vmatpush1.msra.mxu0 0.0
    %175 = vmatprep.subr.mxu0 0.0
    %176 = vmatpush1.msra.mxu0 0.0
    %177 = vmatprep.subr.mxu0 0.0
    %178 = vmatpush1.msra.mxu0 0.0
    %179 = vmatprep.subr.mxu0 0.0
    %180 = vmatpush1.msra.mxu0 0.0
    %181 = vmatprep.subr.mxu0 0.0
    %182 = vmatpush1.msra.mxu0 0.0
    %183 = vmatprep.subr.mxu0 0.0
    %184 = vmatpush1.msra.mxu0 0.0
    %185 = vmatprep.subr.mxu0 0.0
    %186 = vmatpush1.msra.mxu0 0.0
    %187 = vmatprep.subr.mxu0 0.0
    %188 = vmatpush1.msra.mxu0 0.0
    %189 = vmatprep.subr.mxu0 0.0
    %190 = vmatpush1.msra.mxu0 0.0
    %191 = vmatprep.subr.mxu0 0.0
    %192 = vmatpush1.msra.mxu0 0.0
    %193 = vmatprep.subr.mxu0 0.0
    %194 = vmatpush1.msra.mxu0 0.0
    %195 = vmatprep.subr.mxu0 0.0
    %196 = vmatpush1.msra.mxu0 0.0
    %197 = vmatprep.subr.mxu0 0.0
    %198 = vmatpush1.msra.mxu0 0.0
    %199 = vmatprep.subr.mxu0 0.0
    %200 = vmatpush1.msra.mxu0 0.0
    %201 = vmatprep.subr.mxu0 0.0
    %202 = vmatpush1.msra.mxu0 0.0
    %203 = vmatprep.subr.mxu0 0.0
    %204 = vmatpush1.msra.mxu0 0.0
    %205 = vmatprep.subr.mxu0 0.0
    %206 = vmatpush1.msra.mxu0 0.0
    %207 = vmatprep.subr.mxu0 0.0
    %208 = vmatpush1.msra.mxu0 0.0
    %209 = vmatprep.subr.mxu0 0.0
    %210 = vmatpush1.msra.mxu0 0.0
    %211 = vmatprep.subr.mxu0 0.0
    %212 = vmatpush1.msra.mxu0 0.0
    %213 = vmatprep.subr.mxu0 0.0
    %214 = vmatpush1.msra.mxu0 0.0
    %215 = vmatprep.subr.mxu0 0.0
    %216 = vmatpush1.msra.mxu0 0.0
    %217 = vmatprep.subr.mxu0 0.0
    %218 = vmatpush1.msra.mxu0 0.0
    %219 = vmatprep.subr.mxu0 0.0
    %220 = vmatpush1.msra.mxu0 0.0
    %221 = vmatprep.subr.mxu0 0.0
    %222 = vmatpush1.msra.mxu0 0.0
    %223 = vmatprep.subr.mxu0 0.0
    %224 = vmatpush1.msra.mxu0 0.0
    %225 = vmatprep.subr.mxu0 0.0
    %226 = vmatpush1.msra.mxu0 0.0
    %227 = vmatprep.subr.mxu0 0.0
    %228 = vmatpush1.msra.mxu0 0.0
    %229 = vmatprep.subr.mxu0 0.0
    %230 = vmatpush1.msra.mxu0 0.0
    %231 = vmatprep.mubr.f32.mxu0 0.0
    %232 = vmatmul.mubr.f32.gmra.mrb[0].mxu0 %v165
    %v233 = vpop.f32.mrb[0].mxu0
    %v234 = vadd.f32 %v146, %v233
    %v235 = vpop.f32.mrb[0].mxu0
    %v236 = vadd.f32 %v150, %v235
    %237 = vdwg.mxu0
    %238 = vmatprep.subr.mxu0 %v136
    %239 = vmatpush1.msra.mxu0 %v135
    %240 = vmatprep.subr.mxu0 %v140
    %241 = vmatpush1.msra.mxu0 %v139
    %242 = vmatprep.subr.mxu0 0.0
    %243 = vmatpush1.msra.mxu0 0.0
    %244 = vmatprep.subr.mxu0 0.0
    %245 = vmatpush1.msra.mxu0 0.0
    %246 = vmatprep.subr.mxu0 0.0
    %247 = vmatpush1.msra.mxu0 0.0
    %248 = vmatprep.subr.mxu0 0.0
    %249 = vmatpush1.msra.mxu0 0.0
    %250 = vmatprep.subr.mxu0 0.0
    %251 = vmatpush1.msra.mxu0 0.0
    %252 = vmatprep.subr.mxu0 0.0
    %253 = vmatpush1.msra.mxu0 0.0
    %254 = vmatprep.subr.mxu0 0.0
    %255 = vmatpush1.msra.mxu0 0.0
    %256 = vmatprep.subr.mxu0 0.0
    %257 = vmatpush1.msra.mxu0 0.0
    %258 = vmatprep.subr.mxu0 0.0
    %259 = vmatpush1.msra.mxu0 0.0
    %260 = vmatprep.subr.mxu0 0.0
    %261 = vmatpush1.msra.mxu0 0.0
    %262 = vmatprep.subr.mxu0 0.0
    %263 = vmatpush1.msra.mxu0 0.0
    %264 = vmatprep.subr.mxu0 0.0
    %265 = vmatpush1.msra.mxu0 0.0
    %266 = vmatprep.subr.mxu0 0.0
    %267 = vmatpush1.msra.mxu0 0.0
    %268 = vmatprep.subr.mxu0 0.0
    %269 = vmatpush1.msra.mxu0 0.0
    %270 = vmatprep.subr.mxu0 0.0
    %271 = vmatpush1.msra.mxu0 0.0
    %272 = vmatprep.subr.mxu0 0.0
    %273 = vmatpush1.msra.mxu0 0.0
    %274 = vmatprep.subr.mxu0 0.0
    %275 = vmatpush1.msra.mxu0 0.0
    %276 = vmatprep.subr.mxu0 0.0
    %277 = vmatpush1.msra.mxu0 0.0
    %278 = vmatprep.subr.mxu0 0.0
    %279 = vmatpush1.msra.mxu0 0.0
    %280 = vmatprep.subr.mxu0 0.0
    %281 = vmatpush1.msra.mxu0 0.0
    %282 = vmatprep.subr.mxu0 0.0
    %283 = vmatpush1.msra.mxu0 0.0
    %284 = vmatprep.subr.mxu0 0.0
    %285 = vmatpush1.msra.mxu0 0.0
    %286 = vmatprep.subr.mxu0 0.0
    %287 = vmatpush1.msra.mxu0 0.0
    %288 = vmatprep.subr.mxu0 0.0
    %289 = vmatpush1.msra.mxu0 0.0
    %290 = vmatprep.subr.mxu0 0.0
    %291 = vmatpush1.msra.mxu0 0.0
    %292 = vmatprep.subr.mxu0 0.0
    %293 = vmatpush1.msra.mxu0 0.0
    %294 = vmatprep.subr.mxu0 0.0
    %295 = vmatpush1.msra.mxu0 0.0
    %296 = vmatprep.subr.mxu0 0.0
    %297 = vmatpush1.msra.mxu0 0.0
    %298 = vmatprep.subr.mxu0 0.0
    %299 = vmatpush1.msra.mxu0 0.0
    %300 = vmatprep.subr.mxu0 0.0
    %301 = vmatpush1.msra.mxu0 0.0
    %302 = vmatprep.mubr.f32.mxu0 0.0
    %303 = vmatmul.mubr.f32.gmra.mrb[0].mxu0 %v165
    %v304 = vpop.f32.mrb[0].mxu0
    %v305 = vadd.f32 %v154, %v304
    %v306 = vpop.f32.mrb[0].mxu0
    %v307 = vadd.f32 %v158, %v306
    %308 = vdwg.mxu0
    %v311 = vunpack.c.l.s4 1966171168
    %v312 = vunpack.c.0.s8 %v311
    %v313 = vlaneseq
    %v314 = vshrl.u32 %v313, 7
    %v315 = vsub.s32 %v312, %v314
    %v316 = vrot.slane %v234, %v315
    %v317 = vcombine.high %v316, %v316
    %v319 = vunpack.c.l.s4 1966171168
    %v320 = vunpack.c.0.s8 %v319
    %v321 = vlaneseq
    %v322 = vshrl.u32 %v321, 7
    %v323 = vsub.s32 %v320, %v322
    %v324 = vrot.slane %v316, %v323
    %v326 = vunpack.c.l.s4 1966171168
    %v327 = vunpack.c.0.s8 %v326
    %v328 = vlaneseq
    %v329 = vshrl.u32 %v328, 7
    %v330 = vsub.s32 %v327, %v329
    %v331 = vrot.slane %v317, %v330
    %v334 = vunpack.c.l.s4 1966171168
    %v335 = vunpack.c.0.s8 %v334
    %v336 = vlaneseq
    %v337 = vshrl.u32 %v336, 7
    %v338 = vsub.s32 %v335, %v337
    %v339 = vrot.slane %v236, %v338
    %v340 = vcombine.high %v339, %v339
    %v342 = vunpack.c.l.s4 1966171168
    %v343 = vunpack.c.0.s8 %v342
    %v344 = vlaneseq
    %v345 = vshrl.u32 %v344, 7
    %v346 = vsub.s32 %v343, %v345
    %v347 = vrot.slane %v339, %v346
    %v349 = vunpack.c.l.s4 1966171168
    %v350 = vunpack.c.0.s8 %v349
    %v351 = vlaneseq
    %v352 = vshrl.u32 %v351, 7
    %v353 = vsub.s32 %v350, %v352
    %v354 = vrot.slane %v340, %v353
    %v357 = vunpack.c.l.s4 1966171168
    %v358 = vunpack.c.0.s8 %v357
    %v359 = vlaneseq
    %v360 = vshrl.u32 %v359, 7
    %v361 = vsub.s32 %v358, %v360
    %v362 = vrot.slane %v305, %v361
    %v363 = vcombine.high %v362, %v362
    %v365 = vunpack.c.l.s4 1966171168
    %v366 = vunpack.c.0.s8 %v365
    %v367 = vlaneseq
    %v368 = vshrl.u32 %v367, 7
    %v369 = vsub.s32 %v366, %v368
    %v370 = vrot.slane %v362, %v369
    %v372 = vunpack.c.l.s4 1966171168
    %v373 = vunpack.c.0.s8 %v372
    %v374 = vlaneseq
    %v375 = vshrl.u32 %v374, 7
    %v376 = vsub.s32 %v373, %v375
    %v377 = vrot.slane %v363, %v376
    %v380 = vunpack.c.l.s4 1966171168
    %v381 = vunpack.c.0.s8 %v380
    %v382 = vlaneseq
    %v383 = vshrl.u32 %v382, 7
    %v384 = vsub.s32 %v381, %v383
    %v385 = vrot.slane %v307, %v384
    %v386 = vcombine.high %v385, %v385
    %v388 = vunpack.c.l.s4 1966171168
    %v389 = vunpack.c.0.s8 %v388
    %v390 = vlaneseq
    %v391 = vshrl.u32 %v390, 7
    %v392 = vsub.s32 %v389, %v391
    %v393 = vrot.slane %v385, %v392
    %v395 = vunpack.c.l.s4 1966171168
    %v396 = vunpack.c.0.s8 %v395
    %v397 = vlaneseq
    %v398 = vshrl.u32 %v397, 7
    %v399 = vsub.s32 %v396, %v398
    %v400 = vrot.slane %v386, %v399
    %v401 = vld [vmem:[#allocation2] sm:$0xff]
    %v402 = vld [vmem:[#allocation2 + $0x8] sm:$0xff]
    %v403 = vld [vmem:[#allocation2 + $0x10] sm:$0xff]
    %v404 = vld [vmem:[#allocation2 + $0x18] sm:$0xff]
    %v405 = vpack.c.bf16 %v402, %v401
    %v406 = vpack.c.bf16 %v404, %v403
    %v407 = vld [vmem:[#allocation13] sm:$0xf]
    %v408 = vld [vmem:[#allocation13 + $0x4] sm:$0xf]
    %v409 = vld [vmem:[#allocation13 + $0x8] sm:$0xf]
    %v410 = vld [vmem:[#allocation13 + $0xc] sm:$0xf]
    %v411 = vld [vmem:[#allocation13 + $0x10] sm:$0xf]
    %v412 = vld [vmem:[#allocation13 + $0x14] sm:$0xf]
    %v413 = vld [vmem:[#allocation13 + $0x18] sm:$0xf]
    %v414 = vld [vmem:[#allocation13 + $0x1c] sm:$0xf]
    %v415 = vld [vmem:[%s9] sm:$0x1]
    %v417 = vlaneseq
    %v418 = vshrl.u32 %v417, 7
    %v419 = vsub.s32 0, %v418
    %v420 = vrot.slane %v415, %v419
    %v430 = vunpack.c.l.b16 %v407
    %v431 = vunpack.c.l.b16 %v408
    %v432 = vunpack.c.l.b16 %v409
    %v433 = vunpack.c.l.b16 %v410
    %v434 = vunpack.c.l.b16 %v411
    %v435 = vunpack.c.l.b16 %v412
    %v436 = vunpack.c.l.b16 %v413
    %v437 = vunpack.c.l.b16 %v414
    %v438 = vpack.c.b16 %v431, %v430
    %v439 = vpack.c.b16 %v433, %v432
    %v440 = vpack.c.b16 %v435, %v434
    %v441 = vpack.c.b16 %v437, %v436
    %vm446 = vcmask 523264
    %v448 = vsel %vm446, %v405, 0
    %v451 = vsel %vm446, %v406, 0
    %453 = vmatprep.subr.bf16.mxu0 0
    %454 = vmatpush1.bf16.msra.mxu0 %v438
    %455 = vmatprep.subr.bf16.mxu0 0
    %456 = vmatpush1.bf16.msra.mxu0 %v439
    %457 = vmatprep.subr.bf16.mxu0 0
    %458 = vmatpush1.bf16.msra.mxu0 %v440
    %459 = vmatprep.subr.bf16.mxu0 0
    %460 = vmatpush1.bf16.msra.mxu0 %v441
    %461 = vmatprep.subr.bf16.mxu0 0
    %462 = vmatpush1.bf16.msra.mxu0 0
    %463 = vmatprep.subr.bf16.mxu0 0
    %464 = vmatpush1.bf16.msra.mxu0 0
    %465 = vmatprep.subr.bf16.mxu0 0
    %466 = vmatpush1.bf16.msra.mxu0 0
    %467 = vmatprep.subr.bf16.mxu0 0
    %468 = vmatpush1.bf16.msra.mxu0 0
    %469 = vmatprep.subr.bf16.mxu0 0
    %470 = vmatpush1.bf16.msra.mxu0 0
    %471 = vmatprep.subr.bf16.mxu0 0
    %472 = vmatpush1.bf16.msra.mxu0 0
    %473 = vmatprep.subr.bf16.mxu0 0
    %474 = vmatpush1.bf16.msra.mxu0 0
    %475 = vmatprep.subr.bf16.mxu0 0
    %476 = vmatpush1.bf16.msra.mxu0 0
    %477 = vmatprep.subr.bf16.mxu0 0
    %478 = vmatpush1.bf16.msra.mxu0 0
    %479 = vmatprep.subr.bf16.mxu0 0
    %480 = vmatpush1.bf16.msra.mxu0 0
    %481 = vmatprep.subr.bf16.mxu0 0
    %482 = vmatpush1.bf16.msra.mxu0 0
    %483 = vmatprep.subr.bf16.mxu0 0
    %484 = vmatpush1.bf16.msra.mxu0 0
    %485 = vmatprep.mubr.bf16.mxu0 0
    %486 = vmatmul.mubr.bf16.gmra.mrb[0].mxu0 %v448
    %v487 = vpop.f32.mrb[0].mxu0
    %v488 = vadd.f32 %v420, %v487
    %v489 = vpop.f32.mrb[0].mxu0
    %v490 = vpop.f32.mrb[0].mxu0
    %v491 = vadd.f32 %v420, %v490
    %v492 = vpop.f32.mrb[0].mxu0
    %493 = vmatprep.mubr.bf16.mxu0 0
    %494 = vmatmul.mubr.bf16.gmra.mrb[0].mxu0 %v451
    %v495 = vpop.f32.mrb[0].mxu0
    %v496 = vadd.f32 %v420, %v495
    %v497 = vpop.f32.mrb[0].mxu0
    %v498 = vpop.f32.mrb[0].mxu0
    %v499 = vadd.f32 %v420, %v498
    %v500 = vpop.f32.mrb[0].mxu0
    %501 = vdwg.mxu0
    %v502 = vmul.f32 %v401, %v401
    %v503 = vmul.f32 %v402, %v402
    %v504 = vmul.f32 %v403, %v403
    %v505 = vmul.f32 %v404, %v404
    %510 = vrot.lane.b32.xlu0 %v502, 64
    %v511 = vpop.permute.xlu0 %510
    %512 = vrot.lane.b32.xlu0 %v503, 64
    %v513 = vpop.permute.xlu0 %512
    %514 = vrot.lane.b32.xlu0 %v504, 64
    %v515 = vpop.permute.xlu0 %514
    %516 = vrot.lane.b32.xlu0 %v505, 64
    %v517 = vpop.permute.xlu0 %516
    %v522 = vsel %vm446, %v401, %v511
    %v523 = vsel %vm446, %v402, %v513
    %v524 = vsel %vm446, %v403, %v515
    %v525 = vsel %vm446, %v404, %v517
    %vm526 = vcmask 261120
    %v528 = vsel %vm526, 1.0, 0
    %530 = vmatprep.subr.mxu0 0.0
    %531 = vmatpush1.msra.mxu0 %v522
    %532 = vmatprep.subr.mxu0 0.0
    %533 = vmatpush1.msra.mxu0 %v523
    %534 = vmatprep.subr.mxu0 0.0
    %535 = vmatpush1.msra.mxu0 %v524
    %536 = vmatprep.subr.mxu0 0.0
    %537 = vmatpush1.msra.mxu0 %v525
    %538 = vmatprep.subr.mxu0 0.0
    %539 = vmatpush1.msra.mxu0 0.0
    %540 = vmatprep.subr.mxu0 0.0
    %541 = vmatpush1.msra.mxu0 0.0
    %542 = vmatprep.subr.mxu0 0.0
    %543 = vmatpush1.msra.mxu0 0.0
    %544 = vmatprep.subr.mxu0 0.0
    %545 = vmatpush1.msra.mxu0 0.0
    %546 = vmatprep.subr.mxu0 0.0
    %547 = vmatpush1.msra.mxu0 0.0
    %548 = vmatprep.subr.mxu0 0.0
    %549 = vmatpush1.msra.mxu0 0.0
    %550 = vmatprep.subr.mxu0 0.0
    %551 = vmatpush1.msra.mxu0 0.0
    %552 = vmatprep.subr.mxu0 0.0
    %553 = vmatpush1.msra.mxu0 0.0
    %554 = vmatprep.subr.mxu0 0.0
    %555 = vmatpush1.msra.mxu0 0.0
    %556 = vmatprep.subr.mxu0 0.0
    %557 = vmatpush1.msra.mxu0 0.0
    %558 = vmatprep.subr.mxu0 0.0
    %559 = vmatpush1.msra.mxu0 0.0
    %560 = vmatprep.subr.mxu0 0.0
    %561 = vmatpush1.msra.mxu0 0.0
    %562 = vmatprep.subr.mxu0 0.0
    %563 = vmatpush1.msra.mxu0 0.0
    %564 = vmatprep.subr.mxu0 0.0
    %565 = vmatpush1.msra.mxu0 0.0
    %566 = vmatprep.subr.mxu0 0.0
    %567 = vmatpush1.msra.mxu0 0.0
    %568 = vmatprep.subr.mxu0 0.0
    %569 = vmatpush1.msra.mxu0 0.0
    %570 = vmatprep.subr.mxu0 0.0
    %571 = vmatpush1.msra.mxu0 0.0
    %572 = vmatprep.subr.mxu0 0.0
    %573 = vmatpush1.msra.mxu0 0.0
    %574 = vmatprep.subr.mxu0 0.0
    %575 = vmatpush1.msra.mxu0 0.0
    %576 = vmatprep.subr.mxu0 0.0
    %577 = vmatpush1.msra.mxu0 0.0
    %578 = vmatprep.subr.mxu0 0.0
    %579 = vmatpush1.msra.mxu0 0.0
    %580 = vmatprep.subr.mxu0 0.0
    %581 = vmatpush1.msra.mxu0 0.0
    %582 = vmatprep.subr.mxu0 0.0
    %583 = vmatpush1.msra.mxu0 0.0
    %584 = vmatprep.subr.mxu0 0.0
    %585 = vmatpush1.msra.mxu0 0.0
    %586 = vmatprep.subr.mxu0 0.0
    %587 = vmatpush1.msra.mxu0 0.0
    %588 = vmatprep.subr.mxu0 0.0
    %589 = vmatpush1.msra.mxu0 0.0
    %590 = vmatprep.subr.mxu0 0.0
    %591 = vmatpush1.msra.mxu0 0.0
    %592 = vmatprep.subr.mxu0 0.0
    %593 = vmatpush1.msra.mxu0 0.0
    %594 = vmatprep.mubr.f32.mxu0 0.0
    %595 = vmatmul.mubr.f32.gmra.mrb[0].mxu0 %v528
    %v596 = vpop.f32.mrb[0].mxu0
    %v597 = vadd.f32 0.0, %v596
    %v598 = vpop.f32.mrb[0].mxu0
    %599 = vdwg.mxu0
    %v600 = vld [vmem:[#allocation7] sm:$0xff]
    %v601 = vld [vmem:[#allocation7 + $0x8] sm:$0xff]
    %v602 = vld [vmem:[#allocation7 + $0x10] sm:$0xff]
    %v603 = vld [vmem:[#allocation7 + $0x18] sm:$0xff]
    %v604 = vld [vmem:[#allocation7 + $0x20] sm:$0xff]
    %v605 = vld [vmem:[#allocation7 + $0x28] sm:$0xff]
    %v606 = vld [vmem:[#allocation7 + $0x30] sm:$0xff]
    %v607 = vld [vmem:[#allocation7 + $0x38] sm:$0xff]
    %v608 = vld [vmem:[#allocation7 + $0x40] sm:$0xff]
    %v609 = vld [vmem:[#allocation7 + $0x48] sm:$0xff]
    %v610 = vld [vmem:[#allocation7 + $0x50] sm:$0xff]
    %v611 = vld [vmem:[#allocation7 + $0x58] sm:$0xff]
    %v612 = vld [vmem:[#allocation7 + $0x60] sm:$0xff]
    %v613 = vld [vmem:[#allocation7 + $0x68] sm:$0xff]
    %v614 = vld [vmem:[#allocation7 + $0x70] sm:$0xff]
    %v615 = vld [vmem:[#allocation7 + $0x78] sm:$0xff]
    %616 = vmatprep.subr.mxu0 0.0
    %617 = vmatpush1.msra.mxu0 %v600
    %618 = vmatprep.subr.mxu0 0.0
    %619 = vmatpush1.msra.mxu0 %v601
    %620 = vmatprep.subr.mxu0 0.0
    %621 = vmatpush1.msra.mxu0 %v602
    %622 = vmatprep.subr.mxu0 0.0
    %623 = vmatpush1.msra.mxu0 %v603
    %624 = vmatprep.subr.mxu0 0.0
    %625 = vmatpush1.msra.mxu0 %v604
    %626 = vmatprep.subr.mxu0 0.0
    %627 = vmatpush1.msra.mxu0 %v605
    %628 = vmatprep.subr.mxu0 0.0
    %629 = vmatpush1.msra.mxu0 %v606
    %630 = vmatprep.subr.mxu0 0.0
    %631 = vmatpush1.msra.mxu0 %v607
    %632 = vmatprep.subr.mxu0 0.0
    %633 = vmatpush1.msra.mxu0 %v608
    %634 = vmatprep.subr.mxu0 0.0
    %635 = vmatpush1.msra.mxu0 %v609
    %636 = vmatprep.subr.mxu0 0.0
    %637 = vmatpush1.msra.mxu0 %v610
    %638 = vmatprep.subr.mxu0 0.0
    %639 = vmatpush1.msra.mxu0 %v611
    %640 = vmatprep.subr.mxu0 0.0
    %641 = vmatpush1.msra.mxu0 %v612
    %642 = vmatprep.subr.mxu0 0.0
    %643 = vmatpush1.msra.mxu0 %v613
    %644 = vmatprep.subr.mxu0 0.0
    %645 = vmatpush1.msra.mxu0 %v614
    %646 = vmatprep.subr.mxu0 0.0
    %647 = vmatpush1.msra.mxu0 %v615
    %648 = vmatprep.subr.mxu0 0.0
    %649 = vmatpush1.msra.mxu0 0.0
    %650 = vmatprep.subr.mxu0 0.0
    %651 = vmatpush1.msra.mxu0 0.0
    %652 = vmatprep.subr.mxu0 0.0
    %653 = vmatpush1.msra.mxu0 0.0
    %654 = vmatprep.subr.mxu0 0.0
    %655 = vmatpush1.msra.mxu0 0.0
    %656 = vmatprep.subr.mxu0 0.0
    %657 = vmatpush1.msra.mxu0 0.0
    %658 = vmatprep.subr.mxu0 0.0
    %659 = vmatpush1.msra.mxu0 0.0
    %660 = vmatprep.subr.mxu0 0.0
    %661 = vmatpush1.msra.mxu0 0.0
    %662 = vmatprep.subr.mxu0 0.0
    %663 = vmatpush1.msra.mxu0 0.0
    %664 = vmatprep.subr.mxu0 0.0
    %665 = vmatpush1.msra.mxu0 0.0
    %666 = vmatprep.subr.mxu0 0.0
    %667 = vmatpush1.msra.mxu0 0.0
    %668 = vmatprep.subr.mxu0 0.0
    %669 = vmatpush1.msra.mxu0 0.0
    %670 = vmatprep.subr.mxu0 0.0
    %671 = vmatpush1.msra.mxu0 0.0
    %672 = vmatprep.subr.mxu0 0.0
    %673 = vmatpush1.msra.mxu0 0.0
    %674 = vmatprep.subr.mxu0 0.0
    %675 = vmatpush1.msra.mxu0 0.0
    %676 = vmatprep.subr.mxu0 0.0
    %677 = vmatpush1.msra.mxu0 0.0
    %678 = vmatprep.subr.mxu0 0.0
    %679 = vmatpush1.msra.mxu0 0.0
    %680 = vmatprep.mubr.f32.mxu0 0.0
    %681 = vmatmul.mubr.f32.gmra.mrb[0].mxu0 %v597
    %v682 = vpop.f32.mrb[0].mxu0
    %v683 = vadd.f32 0.0, %v682
    %v684 = vpop.f32.mrb[0].mxu0
    %685 = vdwg.mxu0
    %v686 = vmul.f32 %v683, %v683
    %688 = vrot.lane.b32.xlu0 %v686, 64
    %v689 = vpop.permute.xlu0 %688
    %v691 = vsub.f32 %v683, %v689
    %v692 = vadd.f32 %v691, 1e-05
    %v693 = vrsqrt.pop %v692
    %v694 = vlaneseq
    %v695 = vshrl.u32 %v694, 7
    %v696 = vsub.s32 0, %v695
    %v697 = vrot.slane %v683, %v696
    %v698 = vsub.f32 %v401, %v697
    %v699 = vsub.f32 %v402, %v697
    %v700 = vsub.f32 %v403, %v697
    %v701 = vsub.f32 %v404, %v697
    %v702 = vlaneseq
    %v703 = vshrl.u32 %v702, 7
    %v704 = vsub.s32 0, %v703
    %v705 = vrot.slane %v693, %v704
    %707 = vrot.lane.b32.xlu0 %v705, 64
    %v708 = vpop.permute.xlu0 %707
    %v710 = vmul.f32 %v698, %v708
    %v711 = vmul.f32 %v699, %v708
    %v712 = vmul.f32 %v700, %v708
    %v713 = vmul.f32 %v701, %v708
    %v714 = vlaneseq
    %v715 = vshrl.u32 %v714, 7
    %v716 = vsub.s32 0, %v715
    %v717 = vrot.slane %v324, %v716
    %v718 = vlaneseq
    %v719 = vshrl.u32 %v718, 7
    %v720 = vsub.s32 0, %v719
    %v721 = vrot.slane %v331, %v720
    %v724 = vmul.f32 %v710, %v717
    %v725 = vmul.f32 %v711, %v717
    %v726 = vmul.f32 %v712, %v721
    %v727 = vmul.f32 %v713, %v721
    %v728 = vlaneseq
    %v729 = vshrl.u32 %v728, 7
    %v730 = vsub.s32 0, %v729
    %v731 = vrot.slane %v347, %v730
    %v732 = vlaneseq
    %v733 = vshrl.u32 %v732, 7
    %v734 = vsub.s32 0, %v733
    %v735 = vrot.slane %v354, %v734
    %v738 = vadd.f32 %v724, %v731
    %v739 = vadd.f32 %v725, %v731
    %v740 = vadd.f32 %v726, %v735
    %v741 = vadd.f32 %v727, %v735
    %vm742 = vcmp.ge.f32.partialorder %v738, 0.0
    %vm743 = vcmp.ge.f32.partialorder %v739, 0.0
    %vm744 = vcmp.ge.f32.partialorder %v740, 0.0
    %vm745 = vcmp.ge.f32.partialorder %v741, 0.0
    %v746 = vmul.f32 %v738, 0.2
    %v747 = vmul.f32 %v739, 0.2
    %v748 = vmul.f32 %v740, 0.2
    %v749 = vmul.f32 %v741, 0.2
    %v750 = vsel %vm742, %v738, %v746
    %v751 = vsel %vm743, %v739, %v747
    %v752 = vsel %vm744, %v740, %v748
    %v753 = vsel %vm745, %v741, %v749
    %v754 = vlaneseq
    %v755 = vshrl.u32 %v754, 7
    %v756 = vadd.s32 %v755, 8
    %vm757 = vcmp.eq.s32.totalorder %v755, 0
    %vm758 = vcmp.eq.s32.totalorder %v756, 0
    %v759 = vrot.slane %v750, 7
    %v760 = vrot.slane %v751, 7
    %v761 = vrot.slane %v752, 7
    %v762 = vrot.slane %v753, 7
    %vm763 = vcmp.lt.s32.totalorder %v755, 1
    %v764 = vsel %vm763, %v761, %v762
    %v765 = vsel %vm763, %v760, %v761
    %v766 = vsel %vm763, %v759, %v760
    %v767 = vsel %vm763, %v762, %v759
    %v768 = vsel %vm757, 0.0, %v767
    %v769 = vsel %vm758, 0.0, %v766
    %v770 = vsel %vm757, 0.0, %v765
    %v771 = vsel %vm758, 0.0, %v764
    %vm772 = vcmp.eq.s32.totalorder %v755, 15
    %vm773 = vcmp.eq.s32.totalorder %v756, 15
    %v774 = vrot.slane %v750, 1
    %v775 = vrot.slane %v751, 1
    %v776 = vrot.slane %v752, 1
    %v777 = vrot.slane %v753, 1
    %vm778 = vcmp.lt.s32.totalorder %v755, 7
    %v779 = vsel %vm778, %v776, %v777
    %v780 = vsel %vm778, %v775, %v776
    %v781 = vsel %vm778, %v774, %v775
    %v782 = vsel %vm778, %v777, %v774
    %v783 = vsel %vm772, 0.0, %v781
    %v784 = vsel %vm773, 0.0, %v780
    %v785 = vsel %vm772, 0.0, %v779
    %v786 = vsel %vm773, 0.0, %v782
    %791 = vrot.lane.b32.xlu0 %v750, 64
    %v792 = vpop.permute.xlu0 %791
    %793 = vrot.lane.b32.xlu0 %v751, 64
    %v794 = vpop.permute.xlu0 %793
    %795 = vrot.lane.b32.xlu0 %v752, 64
    %v796 = vpop.permute.xlu0 %795
    %797 = vrot.lane.b32.xlu0 %v753, 64
    %v798 = vpop.permute.xlu0 %797
    %v803 = vsel %vm446, %v768, %v792
    %v804 = vsel %vm446, %v769, %v794
    %v805 = vsel %vm446, %v770, %v796
    %v806 = vsel %vm446, %v771, %v798
    %v807 = vpack.c.bf16 %v804, %v803
    %v808 = vpack.c.bf16 %v784, %v783
    %v809 = vpack.c.bf16 %v806, %v805
    %v810 = vpack.c.bf16 %v786, %v785
    %v811 = vld [vmem:[#allocation10] sm:$0xf]
    %v812 = vld [vmem:[#allocation10 + $0x4] sm:$0xf]
    %v813 = vld [vmem:[#allocation10 + $0x8] sm:$0xf]
    %v814 = vld [vmem:[#allocation10 + $0xc] sm:$0xf]
    %v815 = vld [vmem:[#allocation10 + $0x10] sm:$0xf]
    %v816 = vld [vmem:[#allocation10 + $0x14] sm:$0xf]
    %v817 = vld [vmem:[#allocation10 + $0x18] sm:$0xf]
    %v818 = vld [vmem:[#allocation10 + $0x1c] sm:$0xf]
    %v819 = vld [vmem:[#allocation10 + $0x20] sm:$0xf]
    %v820 = vld [vmem:[#allocation10 + $0x24] sm:$0xf]
    %v821 = vld [vmem:[#allocation10 + $0x28] sm:$0xf]
    %v822 = vld [vmem:[#allocation10 + $0x2c] sm:$0xf]
    %v823 = vld [vmem:[#allocation10 + $0x30] sm:$0xf]
    %v824 = vld [vmem:[#allocation10 + $0x34] sm:$0xf]
    %v825 = vld [vmem:[#allocation10 + $0x38] sm:$0xf]
    %v826 = vld [vmem:[#allocation10 + $0x3c] sm:$0xf]
    %v827 = vld [vmem:[#allocation10 + $0x40] sm:$0xf]
    %v828 = vld [vmem:[#allocation10 + $0x44] sm:$0xf]
    %v829 = vld [vmem:[#allocation10 + $0x48] sm:$0xf]
    %v830 = vld [vmem:[#allocation10 + $0x4c] sm:$0xf]
    %v831 = vld [vmem:[#allocation10 + $0x50] sm:$0xf]
    %v832 = vld [vmem:[#allocation10 + $0x54] sm:$0xf]
    %v833 = vld [vmem:[#allocation10 + $0x58] sm:$0xf]
    %v834 = vld [vmem:[#allocation10 + $0x5c] sm:$0xf]
    %v859 = vunpack.c.l.b16 %v811
    %v860 = vunpack.c.l.b16 %v812
    %v861 = vunpack.c.l.b16 %v813
    %v862 = vunpack.c.l.b16 %v814
    %v863 = vunpack.c.l.b16 %v815
    %v864 = vunpack.c.l.b16 %v816
    %v865 = vunpack.c.l.b16 %v817
    %v866 = vunpack.c.l.b16 %v818
    %v867 = vunpack.c.l.b16 %v819
    %v868 = vunpack.c.l.b16 %v820
    %v869 = vunpack.c.l.b16 %v821
    %v870 = vunpack.c.l.b16 %v822
    %v871 = vunpack.c.l.b16 %v823
    %v872 = vunpack.c.l.b16 %v824
    %v873 = vunpack.c.l.b16 %v825
    %v874 = vunpack.c.l.b16 %v826
    %v875 = vunpack.c.l.b16 %v827
    %v876 = vunpack.c.l.b16 %v828
    %v877 = vunpack.c.l.b16 %v829
    %v878 = vunpack.c.l.b16 %v830
    %v879 = vunpack.c.l.b16 %v831
    %v880 = vunpack.c.l.b16 %v832
    %v881 = vunpack.c.l.b16 %v833
    %v882 = vunpack.c.l.b16 %v834
    %v883 = vpack.c.b16 %v860, %v859
    %v884 = vpack.c.b16 %v862, %v861
    %v885 = vpack.c.b16 %v864, %v863
    %v886 = vpack.c.b16 %v866, %v865
    %v887 = vpack.c.b16 %v868, %v867
    %v888 = vpack.c.b16 %v870, %v869
    %v889 = vpack.c.b16 %v872, %v871
    %v890 = vpack.c.b16 %v874, %v873
    %v891 = vpack.c.b16 %v876, %v875
    %v892 = vpack.c.b16 %v878, %v877
    %v893 = vpack.c.b16 %v880, %v879
    %v894 = vpack.c.b16 %v882, %v881
    %v908 = vsel %vm446, %v808, 0
    %v911 = vsel %vm446, %v810, 0
    %913 = vmatprep.subr.bf16.mxu0 0
    %914 = vmatpush1.bf16.msra.mxu0 %v883
    %915 = vmatprep.subr.bf16.mxu0 0
    %916 = vmatpush1.bf16.msra.mxu0 %v884
    %917 = vmatprep.subr.bf16.mxu0 0
    %918 = vmatpush1.bf16.msra.mxu0 %v885
    %919 = vmatprep.subr.bf16.mxu0 0
    %920 = vmatpush1.bf16.msra.mxu0 %v886
    %921 = vmatprep.subr.bf16.mxu0 0
    %922 = vmatpush1.bf16.msra.mxu0 %v887
    %923 = vmatprep.subr.bf16.mxu0 0
    %924 = vmatpush1.bf16.msra.mxu0 %v888
    %925 = vmatprep.subr.bf16.mxu0 0
    %926 = vmatpush1.bf16.msra.mxu0 %v889
    %927 = vmatprep.subr.bf16.mxu0 0
    %928 = vmatpush1.bf16.msra.mxu0 %v890
    %929 = vmatprep.subr.bf16.mxu0 0
    %930 = vmatpush1.bf16.msra.mxu0 %v891
    %931 = vmatprep.subr.bf16.mxu0 0
    %932 = vmatpush1.bf16.msra.mxu0 %v892
    %933 = vmatprep.subr.bf16.mxu0 0
    %934 = vmatpush1.bf16.msra.mxu0 %v893
    %935 = vmatprep.subr.bf16.mxu0 0
    %936 = vmatpush1.bf16.msra.mxu0 %v894
    %937 = vmatprep.subr.bf16.mxu0 0
    %938 = vmatpush1.bf16.msra.mxu0 0
    %939 = vmatprep.subr.bf16.mxu0 0
    %940 = vmatpush1.bf16.msra.mxu0 0
    %941 = vmatprep.subr.bf16.mxu0 0
    %942 = vmatpush1.bf16.msra.mxu0 0
    %943 = vmatprep.subr.bf16.mxu0 0
    %944 = vmatpush1.bf16.msra.mxu0 0
    %945 = vmatprep.mubr.bf16.mxu0 %v908
    %946 = vmatmul.mubr.bf16.gmra.mrb[0].mxu0 %v807
    %v947 = vpop.f32.mrb[0].mxu0
    %v948 = vadd.f32 0.0, %v947
    %v949 = vpop.f32.mrb[0].mxu0
    %v950 = vpop.f32.mrb[0].mxu0
    %v951 = vadd.f32 0.0, %v950
    %v952 = vpop.f32.mrb[0].mxu0
    %953 = vmatprep.mubr.bf16.mxu0 %v911
    %954 = vmatmul.mubr.bf16.gmra.mrb[0].mxu0 %v809
    %v955 = vpop.f32.mrb[0].mxu0
    %v956 = vadd.f32 0.0, %v955
    %v957 = vpop.f32.mrb[0].mxu0
    %v958 = vpop.f32.mrb[0].mxu0
    %v959 = vadd.f32 0.0, %v958
    %v960 = vpop.f32.mrb[0].mxu0
    %961 = vdwg.mxu0
    %v962 = vmul.f32 %v948, %v948
    %v963 = vmul.f32 %v951, %v951
    %v964 = vmul.f32 %v956, %v956
    %v965 = vmul.f32 %v959, %v959
    %966 = vmatprep.subr.mxu0 %v962
    %967 = vmatpush1.msra.mxu0 %v948
    %968 = vmatprep.subr.mxu0 %v963
    %969 = vmatpush1.msra.mxu0 %v951
    %970 = vmatprep.subr.mxu0 %v964
    %971 = vmatpush1.msra.mxu0 %v956
    %972 = vmatprep.subr.mxu0 %v965
    %973 = vmatpush1.msra.mxu0 %v959
    %974 = vmatprep.subr.mxu0 0.0
    %975 = vmatpush1.msra.mxu0 0.0
    %976 = vmatprep.subr.mxu0 0.0
    %977 = vmatpush1.msra.mxu0 0.0
    %978 = vmatprep.subr.mxu0 0.0
    %979 = vmatpush1.msra.mxu0 0.0
    %980 = vmatprep.subr.mxu0 0.0
    %981 = vmatpush1.msra.mxu0 0.0
    %982 = vmatprep.subr.mxu0 0.0
    %983 = vmatpush1.msra.mxu0 0.0
    %984 = vmatprep.subr.mxu0 0.0
    %985 = vmatpush1.msra.mxu0 0.0
    %986 = vmatprep.subr.mxu0 0.0
    %987 = vmatpush1.msra.mxu0 0.0
    %988 = vmatprep.subr.mxu0 0.0
    %989 = vmatpush1.msra.mxu0 0.0
    %990 = vmatprep.subr.mxu0 0.0
    %991 = vmatpush1.msra.mxu0 0.0
    %992 = vmatprep.subr.mxu0 0.0
    %993 = vmatpush1.msra.mxu0 0.0
    %994 = vmatprep.subr.mxu0 0.0
    %995 = vmatpush1.msra.mxu0 0.0
    %996 = vmatprep.subr.mxu0 0.0
    %997 = vmatpush1.msra.mxu0 0.0
    %998 = vmatprep.subr.mxu0 0.0
    %999 = vmatpush1.msra.mxu0 0.0
    %1000 = vmatprep.subr.mxu0 0.0
    %1001 = vmatpush1.msra.mxu0 0.0
    %1002 = vmatprep.subr.mxu0 0.0
    %1003 = vmatpush1.msra.mxu0 0.0
    %1004 = vmatprep.subr.mxu0 0.0
    %1005 = vmatpush1.msra.mxu0 0.0
    %1006 = vmatprep.subr.mxu0 0.0
    %1007 = vmatpush1.msra.mxu0 0.0
    %1008 = vmatprep.subr.mxu0 0.0
    %1009 = vmatpush1.msra.mxu0 0.0
    %1010 = vmatprep.subr.mxu0 0.0
    %1011 = vmatpush1.msra.mxu0 0.0
    %1012 = vmatprep.subr.mxu0 0.0
    %1013 = vmatpush1.msra.mxu0 0.0
    %1014 = vmatprep.subr.mxu0 0.0
    %1015 = vmatpush1.msra.mxu0 0.0
    %1016 = vmatprep.subr.mxu0 0.0
    %1017 = vmatpush1.msra.mxu0 0.0
    %1018 = vmatprep.subr.mxu0 0.0
    %1019 = vmatpush1.msra.mxu0 0.0
    %1020 = vmatprep.subr.mxu0 0.0
    %1021 = vmatpush1.msra.mxu0 0.0
    %1022 = vmatprep.subr.mxu0 0.0
    %1023 = vmatpush1.msra.mxu0 0.0
    %1024 = vmatprep.subr.mxu0 0.0
    %1025 = vmatpush1.msra.mxu0 0.0
    %1026 = vmatprep.subr.mxu0 0.0
    %1027 = vmatpush1.msra.mxu0 0.0
    %1028 = vmatprep.subr.mxu0 0.0
    %1029 = vmatpush1.msra.mxu0 0.0
    %1030 = vmatprep.mubr.f32.mxu0 0.0
    %1031 = vmatmul.mubr.f32.gmra.mrb[0].mxu0 %v528
    %v1032 = vpop.f32.mrb[0].mxu0
    %v1033 = vadd.f32 0.0, %v1032
    %v1034 = vpop.f32.mrb[0].mxu0
    %v1035 = vadd.f32 0.0, %v1034
    %1036 = vdwg.mxu0
    %v1037 = vld [vmem:[#allocation8] sm:$0xff]
    %v1038 = vld [vmem:[#allocation8 + $0x8] sm:$0xff]
    %v1039 = vld [vmem:[#allocation8 + $0x10] sm:$0xff]
    %v1040 = vld [vmem:[#allocation8 + $0x18] sm:$0xff]
    %v1041 = vld [vmem:[#allocation8 + $0x20] sm:$0xff]
    %v1042 = vld [vmem:[#allocation8 + $0x28] sm:$0xff]
    %v1043 = vld [vmem:[#allocation8 + $0x30] sm:$0xff]
    %v1044 = vld [vmem:[#allocation8 + $0x38] sm:$0xff]
    %v1045 = vld [vmem:[#allocation8 + $0x40] sm:$0xff]
    %v1046 = vld [vmem:[#allocation8 + $0x48] sm:$0xff]
    %v1047 = vld [vmem:[#allocation8 + $0x50] sm:$0xff]
    %v1048 = vld [vmem:[#allocation8 + $0x58] sm:$0xff]
    %v1049 = vld [vmem:[#allocation8 + $0x60] sm:$0xff]
    %v1050 = vld [vmem:[#allocation8 + $0x68] sm:$0xff]
    %v1051 = vld [vmem:[#allocation8 + $0x70] sm:$0xff]
    %v1052 = vld [vmem:[#allocation8 + $0x78] sm:$0xff]
    %v1053 = vld [vmem:[#allocation8 + $0x80] sm:$0xff]
    %v1054 = vld [vmem:[#allocation8 + $0x88] sm:$0xff]
    %v1055 = vld [vmem:[#allocation8 + $0x90] sm:$0xff]
    %v1056 = vld [vmem:[#allocation8 + $0x98] sm:$0xff]
    %v1057 = vld [vmem:[#allocation8 + $0xa0] sm:$0xff]
    %v1058 = vld [vmem:[#allocation8 + $0xa8] sm:$0xff]
    %v1059 = vld [vmem:[#allocation8 + $0xb0] sm:$0xff]
    %v1060 = vld [vmem:[#allocation8 + $0xb8] sm:$0xff]
    %v1061 = vld [vmem:[#allocation8 + $0xc0] sm:$0xff]
    %v1062 = vld [vmem:[#allocation8 + $0xc8] sm:$0xff]
    %v1063 = vld [vmem:[#allocation8 + $0xd0] sm:$0xff]
    %v1064 = vld [vmem:[#allocation8 + $0xd8] sm:$0xff]
    %v1065 = vld [vmem:[#allocation8 + $0xe0] sm:$0xff]
    %v1066 = vld [vmem:[#allocation8 + $0xe8] sm:$0xff]
    %v1067 = vld [vmem:[#allocation8 + $0xf0] sm:$0xff]
    %v1068 = vld [vmem:[#allocation8 + $0xf8] sm:$0xff]
    %v1069 = vld [vmem:[#allocation8 + $0x100] sm:$0xff]
    %v1070 = vld [vmem:[#allocation8 + $0x108] sm:$0xff]
    %v1071 = vld [vmem:[#allocation8 + $0x110] sm:$0xff]
    %v1072 = vld [vmem:[#allocation8 + $0x118] sm:$0xff]
    %v1073 = vld [vmem:[#allocation8 + $0x120] sm:$0xff]
    %v1074 = vld [vmem:[#allocation8 + $0x128] sm:$0xff]
    %v1075 = vld [vmem:[#allocation8 + $0x130] sm:$0xff]
    %v1076 = vld [vmem:[#allocation8 + $0x138] sm:$0xff]
    %v1077 = vld [vmem:[#allocation8 + $0x140] sm:$0xff]
    %v1078 = vld [vmem:[#allocation8 + $0x148] sm:$0xff]
    %v1079 = vld [vmem:[#allocation8 + $0x150] sm:$0xff]
    %v1080 = vld [vmem:[#allocation8 + $0x158] sm:$0xff]
    %v1081 = vld [vmem:[#allocation8 + $0x160] sm:$0xff]
    %v1082 = vld [vmem:[#allocation8 + $0x168] sm:$0xff]
    %v1083 = vld [vmem:[#allocation8 + $0x170] sm:$0xff]
    %v1084 = vld [vmem:[#allocation8 + $0x178] sm:$0xff]
    %v1085 = vld [vmem:[#allocation8 + $0x180] sm:$0xff]
    %v1086 = vld [vmem:[#allocation8 + $0x188] sm:$0xff]
    %v1087 = vld [vmem:[#allocation8 + $0x190] sm:$0xff]
    %v1088 = vld [vmem:[#allocation8 + $0x198] sm:$0xff]
    %v1089 = vld [vmem:[#allocation8 + $0x1a0] sm:$0xff]
    %v1090 = vld [vmem:[#allocation8 + $0x1a8] sm:$0xff]
    %v1091 = vld [vmem:[#allocation8 + $0x1b0] sm:$0xff]
    %v1092 = vld [vmem:[#allocation8 + $0x1b8] sm:$0xff]
    %v1093 = vld [vmem:[#allocation8 + $0x1c0] sm:$0xff]
    %v1094 = vld [vmem:[#allocation8 + $0x1c8] sm:$0xff]
    %v1095 = vld [vmem:[#allocation8 + $0x1d0] sm:$0xff]
    %v1096 = vld [vmem:[#allocation8 + $0x1d8] sm:$0xff]
    %v1097 = vld [vmem:[#allocation8 + $0x1e0] sm:$0xff]
    %v1098 = vld [vmem:[#allocation8 + $0x1e8] sm:$0xff]
    %v1099 = vld [vmem:[#allocation8 + $0x1f0] sm:$0xff]
    %v1100 = vld [vmem:[#allocation8 + $0x1f8] sm:$0xff]
    %1101 = vmatprep.subr.mxu0 %v1038
    %1102 = vmatpush1.msra.mxu0 %v1037
    %1103 = vmatprep.subr.mxu0 %v1040
    %1104 = vmatpush1.msra.mxu0 %v1039
    %1105 = vmatprep.subr.mxu0 %v1042
    %1106 = vmatpush1.msra.mxu0 %v1041
    %1107 = vmatprep.subr.mxu0 %v1044
    %1108 = vmatpush1.msra.mxu0 %v1043
    %1109 = vmatprep.subr.mxu0 %v1046
    %1110 = vmatpush1.msra.mxu0 %v1045
    %1111 = vmatprep.subr.mxu0 %v1048
    %1112 = vmatpush1.msra.mxu0 %v1047
    %1113 = vmatprep.subr.mxu0 %v1050
    %1114 = vmatpush1.msra.mxu0 %v1049
    %1115 = vmatprep.subr.mxu0 %v1052
    %1116 = vmatpush1.msra.mxu0 %v1051
    %1117 = vmatprep.subr.mxu0 %v1054
    %1118 = vmatpush1.msra.mxu0 %v1053
    %1119 = vmatprep.subr.mxu0 %v1056
    %1120 = vmatpush1.msra.mxu0 %v1055
    %1121 = vmatprep.subr.mxu0 %v1058
    %1122 = vmatpush1.msra.mxu0 %v1057
    %1123 = vmatprep.subr.mxu0 %v1060
    %1124 = vmatpush1.msra.mxu0 %v1059
    %1125 = vmatprep.subr.mxu0 %v1062
    %1126 = vmatpush1.msra.mxu0 %v1061
    %1127 = vmatprep.subr.mxu0 %v1064
    %1128 = vmatpush1.msra.mxu0 %v1063
    %1129 = vmatprep.subr.mxu0 %v1066
    %1130 = vmatpush1.msra.mxu0 %v1065
    %1131 = vmatprep.subr.mxu0 %v1068
    %1132 = vmatpush1.msra.mxu0 %v1067
    %1133 = vmatprep.subr.mxu0 %v1070
    %1134 = vmatpush1.msra.mxu0 %v1069
    %1135 = vmatprep.subr.mxu0 %v1072
    %1136 = vmatpush1.msra.mxu0 %v1071
    %1137 = vmatprep.subr.mxu0 %v1074
    %1138 = vmatpush1.msra.mxu0 %v1073
    %1139 = vmatprep.subr.mxu0 %v1076
    %1140 = vmatpush1.msra.mxu0 %v1075
    %1141 = vmatprep.subr.mxu0 %v1078
    %1142 = vmatpush1.msra.mxu0 %v1077
    %1143 = vmatprep.subr.mxu0 %v1080
    %1144 = vmatpush1.msra.mxu0 %v1079
    %1145 = vmatprep.subr.mxu0 %v1082
    %1146 = vmatpush1.msra.mxu0 %v1081
    %1147 = vmatprep.subr.mxu0 %v1084
    %1148 = vmatpush1.msra.mxu0 %v1083
    %1149 = vmatprep.subr.mxu0 %v1086
    %1150 = vmatpush1.msra.mxu0 %v1085
    %1151 = vmatprep.subr.mxu0 %v1088
    %1152 = vmatpush1.msra.mxu0 %v1087
    %1153 = vmatprep.subr.mxu0 %v1090
    %1154 = vmatpush1.msra.mxu0 %v1089
    %1155 = vmatprep.subr.mxu0 %v1092
    %1156 = vmatpush1.msra.mxu0 %v1091
    %1157 = vmatprep.subr.mxu0 %v1094
    %1158 = vmatpush1.msra.mxu0 %v1093
    %1159 = vmatprep.subr.mxu0 %v1096
    %1160 = vmatpush1.msra.mxu0 %v1095
    %1161 = vmatprep.subr.mxu0 %v1098
    %1162 = vmatpush1.msra.mxu0 %v1097
    %1163 = vmatprep.subr.mxu0 %v1100
    %1164 = vmatpush1.msra.mxu0 %v1099
    %1165 = vmatprep.mubr.f32.mxu0 %v1035
    %1166 = vmatmul.mubr.f32.gmra.mrb[0].mxu0 %v1033
    %v1167 = vpop.f32.mrb[0].mxu0
    %v1168 = vadd.f32 0.0, %v1167
    %v1169 = vpop.f32.mrb[0].mxu0
    %v1170 = vadd.f32 0.0, %v1169
    %1171 = vdwg.mxu0
    %v1172 = vmul.f32 %v1168, %v1168
    %v1173 = vsub.f32 %v1170, %v1172
    %v1174 = vadd.f32 %v1173, 1e-05
    %v1175 = vrsqrt.pop %v1174
    %v1176 = vlaneseq
    %v1177 = vshrl.u32 %v1176, 7
    %v1178 = vsub.s32 0, %v1177
    %v1179 = vrot.slane %v1168, %v1178
    %v1180 = vsub.f32 %v948, %v1179
    %v1181 = vsub.f32 %v951, %v1179
    %v1182 = vsub.f32 %v956, %v1179
    %v1183 = vsub.f32 %v959, %v1179
    %v1184 = vlaneseq
    %v1185 = vshrl.u32 %v1184, 7
    %v1186 = vsub.s32 0, %v1185
    %v1187 = vrot.slane %v1175, %v1186
    %v1188 = vmul.f32 %v1180, %v1187
    %v1189 = vmul.f32 %v1181, %v1187
    %v1190 = vmul.f32 %v1182, %v1187
    %v1191 = vmul.f32 %v1183, %v1187
    %v1192 = vlaneseq
    %v1193 = vshrl.u32 %v1192, 7
    %v1194 = vsub.s32 0, %v1193
    %v1195 = vrot.slane %v370, %v1194
    %v1196 = vlaneseq
    %v1197 = vshrl.u32 %v1196, 7
    %v1198 = vsub.s32 0, %v1197
    %v1199 = vrot.slane %v377, %v1198
    %v1202 = vmul.f32 %v1188, %v1195
    %v1203 = vmul.f32 %v1189, %v1195
    %v1204 = vmul.f32 %v1190, %v1199
    %v1205 = vmul.f32 %v1191, %v1199
    %v1206 = vlaneseq
    %v1207 = vshrl.u32 %v1206, 7
    %v1208 = vsub.s32 0, %v1207
    %v1209 = vrot.slane %v393, %v1208
    %v1210 = vlaneseq
    %v1211 = vshrl.u32 %v1210, 7
    %v1212 = vsub.s32 0, %v1211
    %v1213 = vrot.slane %v400, %v1212
    %v1216 = vadd.f32 %v1202, %v1209
    %v1217 = vadd.f32 %v1203, %v1209
    %v1218 = vadd.f32 %v1204, %v1213
    %v1219 = vadd.f32 %v1205, %v1213
    %vm1220 = vcmp.ge.f32.partialorder %v1216, 0.0
    %vm1221 = vcmp.ge.f32.partialorder %v1217, 0.0
    %vm1222 = vcmp.ge.f32.partialorder %v1218, 0.0
    %vm1223 = vcmp.ge.f32.partialorder %v1219, 0.0
    %v1224 = vmul.f32 %v1216, 0.2
    %v1225 = vmul.f32 %v1217, 0.2
    %v1226 = vmul.f32 %v1218, 0.2
    %v1227 = vmul.f32 %v1219, 0.2
    %v1228 = vsel %vm1220, %v1216, %v1224
    %v1229 = vsel %vm1221, %v1217, %v1225
    %v1230 = vsel %vm1222, %v1218, %v1226
    %v1231 = vsel %vm1223, %v1219, %v1227
    %v1232 = vrot.slane %v1228, 7
    %v1233 = vrot.slane %v1229, 7
    %v1234 = vrot.slane %v1230, 7
    %v1235 = vrot.slane %v1231, 7
    %v1236 = vsel %vm763, %v1234, %v1235
    %v1237 = vsel %vm763, %v1233, %v1234
    %v1238 = vsel %vm763, %v1232, %v1233
    %v1239 = vsel %vm763, %v1235, %v1232
    %v1240 = vsel %vm757, 0.0, %v1239
    %v1241 = vsel %vm758, 0.0, %v1238
    %v1242 = vsel %vm757, 0.0, %v1237
    %v1243 = vsel %vm758, 0.0, %v1236
    %v1244 = vrot.slane %v1228, 1
    %v1245 = vrot.slane %v1229, 1
    %v1246 = vrot.slane %v1230, 1
    %v1247 = vrot.slane %v1231, 1
    %v1248 = vsel %vm778, %v1246, %v1247
    %v1249 = vsel %vm778, %v1245, %v1246
    %v1250 = vsel %vm778, %v1244, %v1245
    %v1251 = vsel %vm778, %v1247, %v1244
    %v1252 = vsel %vm772, 0.0, %v1250
    %v1253 = vsel %vm773, 0.0, %v1249
    %v1254 = vsel %vm772, 0.0, %v1248
    %v1255 = vsel %vm773, 0.0, %v1251
    %v1256 = vpack.c.bf16 %v1241, %v1240
    %v1257 = vpack.c.bf16 %v1229, %v1228
    %v1258 = vpack.c.bf16 %v1253, %v1252
    %v1259 = vpack.c.bf16 %v1243, %v1242
    %v1260 = vpack.c.bf16 %v1231, %v1230
    %v1261 = vpack.c.bf16 %v1255, %v1254
    %v1262 = vld [vmem:[#allocation11] sm:$0xf]
    %v1263 = vld [vmem:[#allocation11 + $0x4] sm:$0xf]
    %v1264 = vld [vmem:[#allocation11 + $0x8] sm:$0xf]
    %v1265 = vld [vmem:[#allocation11 + $0xc] sm:$0xf]
    %v1266 = vld [vmem:[#allocation11 + $0x10] sm:$0xf]
    %v1267 = vld [vmem:[#allocation11 + $0x14] sm:$0xf]
    %v1268 = vld [vmem:[#allocation11 + $0x18] sm:$0xf]
    %v1269 = vld [vmem:[#allocation11 + $0x1c] sm:$0xf]
    %v1270 = vld [vmem:[#allocation11 + $0x20] sm:$0xf]
    %v1271 = vld [vmem:[#allocation11 + $0x24] sm:$0xf]
    %v1272 = vld [vmem:[#allocation11 + $0x28] sm:$0xf]
    %v1273 = vld [vmem:[#allocation11 + $0x2c] sm:$0xf]
    %v1274 = vld [vmem:[#allocation11 + $0x30] sm:$0xf]
    %v1275 = vld [vmem:[#allocation11 + $0x34] sm:$0xf]
    %v1276 = vld [vmem:[#allocation11 + $0x38] sm:$0xf]
    %v1277 = vld [vmem:[#allocation11 + $0x3c] sm:$0xf]
    %v1278 = vld [vmem:[#allocation11 + $0x40] sm:$0xf]
    %v1279 = vld [vmem:[#allocation11 + $0x44] sm:$0xf]
    %v1280 = vld [vmem:[#allocation11 + $0x48] sm:$0xf]
    %v1281 = vld [vmem:[#allocation11 + $0x4c] sm:$0xf]
    %v1282 = vld [vmem:[#allocation11 + $0x50] sm:$0xf]
    %v1283 = vld [vmem:[#allocation11 + $0x54] sm:$0xf]
    %v1284 = vld [vmem:[#allocation11 + $0x58] sm:$0xf]
    %v1285 = vld [vmem:[#allocation11 + $0x5c] sm:$0xf]
    %v1286 = vld [vmem:[#allocation11 + $0x60] sm:$0xf]
    %v1287 = vld [vmem:[#allocation11 + $0x64] sm:$0xf]
    %v1288 = vld [vmem:[#allocation11 + $0x68] sm:$0xf]
    %v1289 = vld [vmem:[#allocation11 + $0x6c] sm:$0xf]
    %v1290 = vld [vmem:[#allocation11 + $0x70] sm:$0xf]
    %v1291 = vld [vmem:[#allocation11 + $0x74] sm:$0xf]
    %v1292 = vld [vmem:[#allocation11 + $0x78] sm:$0xf]
    %v1293 = vld [vmem:[#allocation11 + $0x7c] sm:$0xf]
    %v1294 = vld [vmem:[#allocation11 + $0x80] sm:$0xf]
    %v1295 = vld [vmem:[#allocation11 + $0x84] sm:$0xf]
    %v1296 = vld [vmem:[#allocation11 + $0x88] sm:$0xf]
    %v1297 = vld [vmem:[#allocation11 + $0x8c] sm:$0xf]
    %v1298 = vld [vmem:[#allocation11 + $0x90] sm:$0xf]
    %v1299 = vld [vmem:[#allocation11 + $0x94] sm:$0xf]
    %v1300 = vld [vmem:[#allocation11 + $0x98] sm:$0xf]
    %v1301 = vld [vmem:[#allocation11 + $0x9c] sm:$0xf]
    %v1302 = vld [vmem:[#allocation11 + $0xa0] sm:$0xf]
    %v1303 = vld [vmem:[#allocation11 + $0xa4] sm:$0xf]
    %v1304 = vld [vmem:[#allocation11 + $0xa8] sm:$0xf]
    %v1305 = vld [vmem:[#allocation11 + $0xac] sm:$0xf]
    %v1306 = vld [vmem:[#allocation11 + $0xb0] sm:$0xf]
    %v1307 = vld [vmem:[#allocation11 + $0xb4] sm:$0xf]
    %v1308 = vld [vmem:[#allocation11 + $0xb8] sm:$0xf]
    %v1309 = vld [vmem:[#allocation11 + $0xbc] sm:$0xf]
    %v1358 = vunpack.c.l.b16 %v1262
    %v1359 = vunpack.c.l.b16 %v1263
    %v1360 = vunpack.c.l.b16 %v1264
    %v1361 = vunpack.c.l.b16 %v1265
    %v1362 = vunpack.c.l.b16 %v1266
    %v1363 = vunpack.c.l.b16 %v1267
    %v1364 = vunpack.c.l.b16 %v1268
    %v1365 = vunpack.c.l.b16 %v1269
    %v1366 = vunpack.c.l.b16 %v1270
    %v1367 = vunpack.c.l.b16 %v1271
    %v1368 = vunpack.c.l.b16 %v1272
    %v1369 = vunpack.c.l.b16 %v1273
    %v1370 = vunpack.c.l.b16 %v1274
    %v1371 = vunpack.c.l.b16 %v1275
    %v1372 = vunpack.c.l.b16 %v1276
    %v1373 = vunpack.c.l.b16 %v1277
    %v1374 = vunpack.c.l.b16 %v1278
    %v1375 = vunpack.c.l.b16 %v1279
    %v1376 = vunpack.c.l.b16 %v1280
    %v1377 = vunpack.c.l.b16 %v1281
    %v1378 = vunpack.c.l.b16 %v1282
    %v1379 = vunpack.c.l.b16 %v1283
    %v1380 = vunpack.c.l.b16 %v1284
    %v1381 = vunpack.c.l.b16 %v1285
    %v1382 = vunpack.c.l.b16 %v1286
    %v1383 = vunpack.c.l.b16 %v1287
    %v1384 = vunpack.c.l.b16 %v1288
    %v1385 = vunpack.c.l.b16 %v1289
    %v1386 = vunpack.c.l.b16 %v1290
    %v1387 = vunpack.c.l.b16 %v1291
    %v1388 = vunpack.c.l.b16 %v1292
    %v1389 = vunpack.c.l.b16 %v1293
    %v1390 = vunpack.c.l.b16 %v1294
    %v1391 = vunpack.c.l.b16 %v1295
    %v1392 = vunpack.c.l.b16 %v1296
    %v1393 = vunpack.c.l.b16 %v1297
    %v1394 = vunpack.c.l.b16 %v1298
    %v1395 = vunpack.c.l.b16 %v1299
    %v1396 = vunpack.c.l.b16 %v1300
    %v1397 = vunpack.c.l.b16 %v1301
    %v1398 = vunpack.c.l.b16 %v1302
    %v1399 = vunpack.c.l.b16 %v1303
    %v1400 = vunpack.c.l.b16 %v1304
    %v1401 = vunpack.c.l.b16 %v1305
    %v1402 = vunpack.c.l.b16 %v1306
    %v1403 = vunpack.c.l.b16 %v1307
    %v1404 = vunpack.c.l.b16 %v1308
    %v1405 = vunpack.c.l.b16 %v1309
    %v1406 = vpack.c.b16 %v1359, %v1358
    %v1407 = vpack.c.b16 %v1361, %v1360
    %v1408 = vpack.c.b16 %v1363, %v1362
    %v1409 = vpack.c.b16 %v1365, %v1364
    %v1410 = vpack.c.b16 %v1367, %v1366
    %v1411 = vpack.c.b16 %v1369, %v1368
    %v1412 = vpack.c.b16 %v1371, %v1370
    %v1413 = vpack.c.b16 %v1373, %v1372
    %v1414 = vpack.c.b16 %v1375, %v1374
    %v1415 = vpack.c.b16 %v1377, %v1376
    %v1416 = vpack.c.b16 %v1379, %v1378
    %v1417 = vpack.c.b16 %v1381, %v1380
    %v1418 = vpack.c.b16 %v1383, %v1382
    %v1419 = vpack.c.b16 %v1385, %v1384
    %v1420 = vpack.c.b16 %v1387, %v1386
    %v1421 = vpack.c.b16 %v1389, %v1388
    %v1422 = vpack.c.b16 %v1391, %v1390
    %v1423 = vpack.c.b16 %v1393, %v1392
    %v1424 = vpack.c.b16 %v1395, %v1394
    %v1425 = vpack.c.b16 %v1397, %v1396
    %v1426 = vpack.c.b16 %v1399, %v1398
    %v1427 = vpack.c.b16 %v1401, %v1400
    %v1428 = vpack.c.b16 %v1403, %v1402
    %v1429 = vpack.c.b16 %v1405, %v1404
    %1454 = vmatprep.subr.bf16.mxu0 0
    %1455 = vmatpush1.bf16.msra.mxu0 %v1406
    %1456 = vmatprep.subr.bf16.mxu0 0
    %1457 = vmatpush1.bf16.msra.mxu0 %v1407
    %1458 = vmatprep.subr.bf16.mxu0 0
    %1459 = vmatpush1.bf16.msra.mxu0 %v1408
    %1460 = vmatprep.subr.bf16.mxu0 0
    %1461 = vmatpush1.bf16.msra.mxu0 %v1409
    %1462 = vmatprep.subr.bf16.mxu0 0
    %1463 = vmatpush1.bf16.msra.mxu0 %v1410
    %1464 = vmatprep.subr.bf16.mxu0 0
    %1465 = vmatpush1.bf16.msra.mxu0 %v1411
    %1466 = vmatprep.subr.bf16.mxu0 0
    %1467 = vmatpush1.bf16.msra.mxu0 %v1412
    %1468 = vmatprep.subr.bf16.mxu0 0
    %1469 = vmatpush1.bf16.msra.mxu0 %v1413
    %1470 = vmatprep.subr.bf16.mxu0 0
    %1471 = vmatpush1.bf16.msra.mxu0 %v1414
    %1472 = vmatprep.subr.bf16.mxu0 0
    %1473 = vmatpush1.bf16.msra.mxu0 %v1415
    %1474 = vmatprep.subr.bf16.mxu0 0
    %1475 = vmatpush1.bf16.msra.mxu0 %v1416
    %1476 = vmatprep.subr.bf16.mxu0 0
    %1477 = vmatpush1.bf16.msra.mxu0 %v1417
    %1478 = vmatprep.subr.bf16.mxu0 0
    %1479 = vmatpush1.bf16.msra.mxu0 %v1418
    %1480 = vmatprep.subr.bf16.mxu0 0
    %1481 = vmatpush1.bf16.msra.mxu0 %v1419
    %1482 = vmatprep.subr.bf16.mxu0 0
    %1483 = vmatpush1.bf16.msra.mxu0 %v1420
    %1484 = vmatprep.subr.bf16.mxu0 0
    %1485 = vmatpush1.bf16.msra.mxu0 %v1421
    %1486 = vmatprep.mubr.bf16.mxu0 %v1257
    %1487 = vmatmul.mubr.bf16.gmra.mrb[0].mxu0 %v1256
    %v1488 = vpop.f32.mrb[0].mxu0
    %v1489 = vadd.f32 0.0, %v1488
    %v1490 = vpop.f32.mrb[0].mxu0
    %v1491 = vpop.f32.mrb[0].mxu0
    %v1492 = vadd.f32 0.0, %v1491
    %v1493 = vpop.f32.mrb[0].mxu0
    %1494 = vmatprep.mubr.bf16.mxu0 %v1260
    %1495 = vmatmul.mubr.bf16.gmra.mrb[0].mxu0 %v1259
    %v1496 = vpop.f32.mrb[0].mxu0
    %v1497 = vadd.f32 0.0, %v1496
    %v1498 = vpop.f32.mrb[0].mxu0
    %v1499 = vpop.f32.mrb[0].mxu0
    %v1500 = vadd.f32 0.0, %v1499
    %v1501 = vpop.f32.mrb[0].mxu0
    %1502 = vdwg.mxu0
    %1503 = vmatprep.subr.bf16.mxu0 0
    %1504 = vmatpush1.bf16.msra.mxu0 %v1422
    %1505 = vmatprep.subr.bf16.mxu0 0
    %1506 = vmatpush1.bf16.msra.mxu0 %v1423
    %1507 = vmatprep.subr.bf16.mxu0 0
    %1508 = vmatpush1.bf16.msra.mxu0 %v1424
    %1509 = vmatprep.subr.bf16.mxu0 0
    %1510 = vmatpush1.bf16.msra.mxu0 %v1425
    %1511 = vmatprep.subr.bf16.mxu0 0
    %1512 = vmatpush1.bf16.msra.mxu0 %v1426
    %1513 = vmatprep.subr.bf16.mxu0 0
    %1514 = vmatpush1.bf16.msra.mxu0 %v1427
    %1515 = vmatprep.subr.bf16.mxu0 0
    %1516 = vmatpush1.bf16.msra.mxu0 %v1428
    %1517 = vmatprep.subr.bf16.mxu0 0
    %1518 = vmatpush1.bf16.msra.mxu0 %v1429
    %1519 = vmatprep.subr.bf16.mxu0 0
    %1520 = vmatpush1.bf16.msra.mxu0 0
    %1521 = vmatprep.subr.bf16.mxu0 0
    %1522 = vmatpush1.bf16.msra.mxu0 0
    %1523 = vmatprep.subr.bf16.mxu0 0
    %1524 = vmatpush1.bf16.msra.mxu0 0
    %1525 = vmatprep.subr.bf16.mxu0 0
    %1526 = vmatpush1.bf16.msra.mxu0 0
    %1527 = vmatprep.subr.bf16.mxu0 0
    %1528 = vmatpush1.bf16.msra.mxu0 0
    %1529 = vmatprep.subr.bf16.mxu0 0
    %1530 = vmatpush1.bf16.msra.mxu0 0
    %1531 = vmatprep.subr.bf16.mxu0 0
    %1532 = vmatpush1.bf16.msra.mxu0 0
    %1533 = vmatprep.subr.bf16.mxu0 0
    %1534 = vmatpush1.bf16.msra.mxu0 0
    %1535 = vmatprep.mubr.bf16.mxu0 0
    %1536 = vmatmul.mubr.bf16.gmra.mrb[0].mxu0 %v1258
    %v1537 = vpop.f32.mrb[0].mxu0
    %v1538 = vadd.f32 %v1489, %v1537
    %v1539 = vpop.f32.mrb[0].mxu0
    %v1540 = vpop.f32.mrb[0].mxu0
    %v1541 = vadd.f32 %v1492, %v1540
    %v1542 = vpop.f32.mrb[0].mxu0
    %1543 = vmatprep.mubr.bf16.mxu0 0
    %1544 = vmatmul.mubr.bf16.gmra.mrb[0].mxu0 %v1261
    %v1545 = vpop.f32.mrb[0].mxu0
    %v1546 = vadd.f32 %v1497, %v1545
    %v1547 = vpop.f32.mrb[0].mxu0
    %v1548 = vpop.f32.mrb[0].mxu0
    %v1549 = vadd.f32 %v1500, %v1548
    %v1550 = vpop.f32.mrb[0].mxu0
    %1551 = vdwg.mxu0
    %v1552 = vadd.f32 %v488, %v1538
    %v1553 = vadd.f32 %v491, %v1541
    %v1554 = vadd.f32 %v496, %v1546
    %v1555 = vadd.f32 %v499, %v1549
    %1556 = vst [vmem:[#allocation14] sm:$0xff] %v1552
    %1557 = vst [vmem:[#allocation14 + $0x8] sm:$0xff] %v1553
    %1558 = vst [vmem:[#allocation14 + $0x10] sm:$0xff] %v1554
    %1559 = vst [vmem:[#allocation14 + $0x18] sm:$0xff] %v1555
    // Predicated region
    $region70: #{tpu_custom_call.1} parent=1 // pred_check
      _
    $region71: #{tpu_custom_call.1} parent=1 // pred_check_branch
      %1561 = sbr.rel (0) target = $region73
    $region72: #{tpu_custom_call.1} parent=1 // pred_region
      %s1563 = ssub.s32 512, 512
      %1564 = vsyncadd [#allocation4], %s1563
      %s1565 = sshll.u32 [#allocation14], 4
      %s1566 = int_to_ptr.vmem [resolvable:$true] %s1565
      %1571 = dma.vmem_to_hbm [thread:$0]  %s1566, 512, %s10, [#allocation4], 128, 128, 8
    $region73: #{tpu_custom_call.1} parent=1 // pred_fallthru
      _
    // Predicated region
    $region74: #{tpu_custom_call.1} parent=1 // pred_check
      _
    $region75: #{tpu_custom_call.1} parent=1 // pred_check_branch
      %1573 = sbr.rel (0) target = $region77
    $region76: #{tpu_custom_call.1} parent=1 // pred_region
      %1574 = dma.done [#allocation4], 512
    $region77: #{tpu_custom_call.1} parent=1 // pred_fallthru
      _
    %1575 = vsyncpa [#allocation3], 1
    %1576 = vsyncpa [#allocation6], 1
    %1577 = vsyncpa [#allocation9], 1
    %1578 = vsyncpa [#allocation12], 1
    %1579 = vsyncpa [#allocation4], 1

</llo_original>
